<compile_context>
chip_gen: v7x
topology: tpu7x:2x2x1
jax: 0.10.0
libtpu: 0.0.40
codegen_flags: <defaults>
</compile_context>

<pallas_src>
import functools

import jax
import jax.numpy as jnp
from jax import lax
from jax.experimental import pallas as pl
from jax.experimental.pallas import tpu as pltpu


def _relu(v):
    return jnp.maximum(v, 0.0)


def _round_up(v, m):
    return ((v + m - 1) // m) * m


def _no_trade_rnn_kernel(scal_ref, x_ref, r_ref, out_ref, h_scr, *, unroll):
    """One (B-tile, T-chunk) grid step of the no-trade-region recurrence.

    scal_ref : SMEM f32[22]  precombined geometry constants + per-asset scalar weights
    x_ref    : VMEM f32[2, Tc, Bt]  inputs   (asset, time-sublane, batch-lane)
    r_ref    : VMEM f32[2, Tc, Bt]  returns shifted by one step (r_shift[i] = r[i-1])
    out_ref  : VMEM f32[2, Tc, Bt]  per-step hidden states
    h_scr    : VMEM f32[2, Bt]      hidden-state carry across T chunks
    """
    t = pl.program_id(1)
    Tc = x_ref.shape[1]

    one = jnp.float32(1.0)

    # Hoisted scalar reads (stay in sregs; multiplies become scalar splats).
    bd, ac = scal_ref[0], scal_ref[1]
    A_lx, K_lx, B_lx = scal_ref[2], scal_ref[3], scal_ref[4]
    A_ux, K_ux, B_ux = scal_ref[5], scal_ref[6], scal_ref[7]
    A_ly, K_ly, B_ly = scal_ref[8], scal_ref[9], scal_ref[10]
    A_uy, K_uy, B_uy = scal_ref[11], scal_ref[12], scal_ref[13]
    w_in0, w_in1 = scal_ref[14], scal_ref[15]
    w_hid0, w_hid1 = scal_ref[16], scal_ref[17]
    w_fc1_0, w_fc1_1 = scal_ref[18], scal_ref[19]
    w_fc2_0, w_fc2_1 = scal_ref[20], scal_ref[21]

    # New B-tile: reset the hidden-state carry (global step 0 overrides it anyway).
    @pl.when(t == 0)
    def _():
        h_scr[...] = jnp.zeros_like(h_scr)

    h0_init = h_scr[0:1, :]   # (1, Bt) asset-0 hidden
    h1_init = h_scr[1:2, :]   # (1, Bt) asset-1 hidden

    def body(j, carry):
        hx, hy = carry
        r0 = r_ref[0, pl.ds(j, 1), :]
        r1 = r_ref[1, pl.ds(j, 1), :]
        x0 = x_ref[0, pl.ds(j, 1), :]
        x1 = x_ref[1, pl.ds(j, 1), :]

        # adjust_pi = h * (1 + r_prev) / (1 + sum(h * r_prev))
        denom = one + (hx * r0 + hy * r1)
        inv = pl.reciprocal(denom, approx=False)
        axp = hx * (one + r0) * inv
        ayp = hy * (one + r1) * inv

        # no-trade-region bounds (constants pre-combined in the wrapper)
        lbx = -_relu(-_relu((ayp - A_lx) * bd) + K_lx) + B_lx
        ubx = -_relu(-_relu((ayp - A_ux) * bd) + K_ux) + B_ux
        lby = -_relu(-_relu((axp - A_ly) * ac) + K_ly) + B_ly
        uby = -_relu(-_relu((axp - A_uy) * ac) + K_uy) + B_uy

        # recurrence (per asset, scalar weights)
        g0 = w_in0 * x0 + w_hid0 * axp - lbx
        g0 = w_fc1_0 * _relu(g0) + ubx - lbx
        h0n = w_fc2_0 * _relu(g0) + ubx

        g1 = w_in1 * x1 + w_hid1 * ayp - lby
        g1 = w_fc1_1 * _relu(g1) + uby - lby
        h1n = w_fc2_1 * _relu(g1) + uby

        # Global step 0: hidden is a straight copy of the input slice.
        first = jnp.logical_and(t == 0, j == 0)
        h0n = jnp.where(first, x0, h0n)
        h1n = jnp.where(first, x1, h1n)

        out_ref[0, pl.ds(j, 1), :] = h0n
        out_ref[1, pl.ds(j, 1), :] = h1n
        return (h0n, h1n)

    h0, h1 = lax.fori_loop(0, Tc, body, (h0_init, h1_init), unroll=unroll)

    # Carry the hidden state to the next T chunk of this B tile.
    h_scr[0:1, :] = h0
    h_scr[1:2, :] = h1


def no_trade_region_rnn2_forward(x, target, returns_partition, hidden, rotate_w, w_all,
                                 *, max_t_chunk=512, max_b_tile=512):
    """JAX wrapper reproducing NoTradeRegionRNN2.forward.

    x, returns_partition : (2, T, B) float32 (PyTorch layout: dim, seq, batch)
    target               : (2,) float32
    hidden               : unused (overwritten at step 0, as in the original module)
    rotate_w             : (2, 2) rotate_param.weight
    w_all                : (2, 4) columns = [input, hidden, fc1, fc2] per-dim scalar weights
    Returns (output (2, T, B), final_hidden (2, 1, B)).
    """
    del hidden  # the reference module overwrites it at step 0
    dim, T, B = x.shape
    assert dim == 2, "NoTradeRegionRNN2 geometry requires dim_size == 2"
    f32 = jnp.float32

    x = x.astype(f32)
    r = returns_partition.astype(f32)
    rotate_w = rotate_w.astype(f32)
    w_all = w_all.astype(f32)
    target = target.astype(f32)

    # --- tiny constant setup (corner(), ac, bd) hoisted & pre-combined -------------
    M2 = jnp.array([[-1.0, 0.0, 1.0, 0.0],
                    [0.0, -1.0, 0.0, 1.0]], dtype=f32)
    C = (rotate_w @ M2).T + target                                   # (4, 2)
    ac = (rotate_w[1, 0] + rotate_w[1, 1]) / (rotate_w[0, 0] + rotate_w[0, 1])
    bd = (rotate_w[0, 0] - rotate_w[0, 1]) / (rotate_w[1, 0] - rotate_w[1, 1])
    bd_ge = (bd >= 0).astype(f32)
    bd_lt = 1.0 - bd_ge
    ac_ge = (ac >= 0).astype(f32)
    ac_lt = 1.0 - ac_ge

    scal = jnp.stack([
        bd, ac,
        # lower_bound_x : A, K, B
        C[0, 1] * bd_ge + C[1, 1] * bd_lt, jnp.abs(C[1, 0] - C[0, 0]),
        C[1, 0] * bd_ge + C[0, 0] * bd_lt,
        # upper_bound_x
        C[3, 1] * bd_ge + C[2, 1] * bd_lt, jnp.abs(C[2, 0] - C[3, 0]),
        C[2, 0] * bd_ge + C[3, 0] * bd_lt,
        # lower_bound_y
        C[0, 0] * ac_ge + C[3, 0] * ac_lt, jnp.abs(C[0, 1] - C[3, 1]),
        C[3, 1] * ac_ge + C[0, 1] * ac_lt,
        # upper_bound_y
        C[1, 0] * ac_ge + C[2, 0] * ac_lt, jnp.abs(C[1, 1] - C[2, 1]),
        C[2, 1] * ac_ge + C[1, 1] * ac_lt,
        # per-asset scalar weights [input | hidden | fc1 | fc2]
        w_all[0, 0], w_all[1, 0], w_all[0, 1], w_all[1, 1],
        w_all[0, 2], w_all[1, 2], w_all[0, 3], w_all[1, 3],
    ]).astype(f32)

    # --- layout & padding: asset-major (2, T, B); pre-shift returns by one step ----
    r_shift = jnp.concatenate([jnp.zeros((2, 1, B), f32), r[:, :T - 1, :]], axis=1)

    Bt = _round_up(min(_round_up(B, 128), max_b_tile), 128)
    B_pad = _round_up(B, Bt)
    Tc = _round_up(min(_round_up(T, 8), max_t_chunk), 8)
    T_pad = _round_up(T, Tc)

    x_p = jnp.pad(x, ((0, 0), (0, T_pad - T), (0, B_pad - B)))
    r_p = jnp.pad(r_shift, ((0, 0), (0, T_pad - T), (0, B_pad - B)))

    nb = B_pad // Bt
    nt = T_pad // Tc

    kernel = functools.partial(_no_trade_rnn_kernel, unroll=min(8, Tc))

    out_p = pl.pallas_call(
        kernel,
        out_shape=jax.ShapeDtypeStruct((2, T_pad, B_pad), f32),
        grid_spec=pltpu.PrefetchScalarGridSpec(
            num_scalar_prefetch=1,
            grid=(nb, nt),
            in_specs=[
                pl.BlockSpec((2, Tc, Bt), lambda b, t, s: (0, t, b)),  # x
                pl.BlockSpec((2, Tc, Bt), lambda b, t, s: (0, t, b)),  # shifted returns
            ],
            out_specs=pl.BlockSpec((2, Tc, Bt), lambda b, t, s: (0, t, b)),
            scratch_shapes=[pltpu.VMEM((2, Bt), f32)],                 # hidden carry
        ),
        compiler_params=pltpu.CompilerParams(
            dimension_semantics=("parallel", "arbitrary"),
            vmem_limit_bytes=32 * 1024 * 1024,
        ),
    )(scal, x_p, r_p)

    output = out_p[:, :T, :B]                                          # (2, T, B)
    final_hidden = output[:, T - 1, :].reshape(2, 1, B)
    return output, final_hidden


# ------------------------- pure-JAX reference (for checking) -------------------------
def reference_forward(x, target, returns_partition, rotate_w, w_all):
    dim, T, B = x.shape
    M2 = jnp.array([[-1.0, 0.0, 1.0, 0.0],
                    [0.0, -1.0, 0.0, 1.0]], dtype=jnp.float32)
    C = (rotate_w @ M2).T + target
    ac = (rotate_w[1, 0] + rotate_w[1, 1]) / (rotate_w[0, 0] + rotate_w[0, 1])
    bd = (rotate_w[0, 0] - rotate_w[0, 1]) / (rotate_w[1, 0] - rotate_w[1, 1])
    bd_ge = (bd >= 0).astype(jnp.float32); bd_lt = 1.0 - bd_ge
    ac_ge = (ac >= 0).astype(jnp.float32); ac_lt = 1.0 - ac_ge
    w_in, w_hid, w_fc1, w_fc2 = [w_all[:, k][:, None, None] for k in range(4)]
    relu = lambda v: jnp.maximum(v, 0.0)

    def bounds(h):                       # h: (2, 1, B)
        hx, hy = h[0, 0], h[1, 0]
        g = (hy - C[0, 1] * bd_ge - C[1, 1] * bd_lt) * bd
        lbx = -relu(-relu(g) + jnp.abs(C[1, 0] - C[0, 0])) + C[1, 0] * bd_ge + C[0, 0] * bd_lt
        g = (hy - C[3, 1] * bd_ge - C[2, 1] * bd_lt) * bd
        ubx = -relu(-relu(g) + jnp.abs(C[2, 0] - C[3, 0])) + C[2, 0] * bd_ge + C[3, 0] * bd_lt
        g = (hx - C[0, 0] * ac_ge - C[3, 0] * ac_lt) * ac
        lby = -relu(-relu(g) + jnp.abs(C[0, 1] - C[3, 1])) + C[3, 1] * ac_ge + C[0, 1] * ac_lt
        g = (hx - C[1, 0] * ac_ge - C[2, 0] * ac_lt) * ac
        uby = -relu(-relu(g) + jnp.abs(C[1, 1] - C[2, 1])) + C[2, 1] * ac_ge + C[1, 1] * ac_lt
        return (jnp.stack([lbx, lby]).reshape(2, 1, B),
                jnp.stack([ubx, uby]).reshape(2, 1, B))

    def recurrence(x_t, h):
        lb, ub = bounds(h)
        ingate = w_in * x_t + w_hid * h - lb
        ingate2 = w_fc1 * relu(ingate) + ub - lb
        return w_fc2 * relu(ingate2) + ub

    outs = []
    hidden = x[:, 0, :].reshape(2, 1, B)
    outs.append(hidden)
    for i in range(1, T):
        r_prev = returns_partition[:, i - 1, :].reshape(2, 1, B)
        adj = hidden * (1.0 + r_prev) / (1.0 + jnp.sum(hidden * r_prev, axis=0))
        hidden = recurrence(x[:, i, :].reshape(2, 1, B), adj)
        outs.append(hidden)
    return jnp.concatenate(outs, axis=1), hidden


if __name__ == "__main__":
    DIM = 2
    key = jax.random.PRNGKey(0)
    kx, kr, kw, kx2, kr2 = jax.random.split(key, 5)

    # Deterministic synthetic parameters (no checkpoint loading).
    rotate_w = jnp.array([[0.8, -0.3],
                          [0.4, 0.9]], dtype=jnp.float32)               # rotate_param.weight
    target = jnp.array([0.1, -0.2], dtype=jnp.float32)
    w_all = 0.5 * jax.random.normal(kw, (DIM, 4), dtype=jnp.float32)    # [input|hidden|fc1|fc2]

    # --- small case (single grid cell, B padded to one 128-lane tile) ---------------
    T, B = 8, 8
    x = 0.3 * jax.random.normal(kx, (DIM, T, B), dtype=jnp.float32)
    returns_partition = 0.05 * jax.random.normal(kr, (DIM, T, B), dtype=jnp.float32)
    hidden0 = jnp.zeros((DIM, 1, B), dtype=jnp.float32)                 # unused, as in module

    out, hT = no_trade_region_rnn2_forward(x, target, returns_partition, hidden0,
                                           rotate_w, w_all)
    out = jax.block_until_ready(out)
    hT = jax.block_until_ready(hT)

    ref_out, ref_hT = reference_forward(x, target, returns_partition, rotate_w, w_all)
    assert out.shape == (DIM, T, B) and hT.shape == (DIM, 1, B)
    assert jnp.allclose(out, ref_out, atol=1e-5, rtol=1e-5)
    assert jnp.allclose(hT, ref_hT, atol=1e-5, rtol=1e-5)

    # --- multi-tile case (exercises T-chunk hidden carry + B-tile "parallel" axis) --
    T2, B2 = 24, 300
    x2 = 0.3 * jax.random.normal(kx2, (DIM, T2, B2), dtype=jnp.float32)
    r2 = 0.05 * jax.random.normal(kr2, (DIM, T2, B2), dtype=jnp.float32)
    hidden2 = jnp.zeros((DIM, 1, B2), dtype=jnp.float32)
    out2, hT2 = no_trade_region_rnn2_forward(x2, target, r2, hidden2, rotate_w, w_all,
                                             max_t_chunk=8, max_b_tile=128)
    out2 = jax.block_until_ready(out2)
    hT2 = jax.block_until_ready(hT2)

    ref_out2, ref_hT2 = reference_forward(x2, target, r2, rotate_w, w_all)
    assert jnp.allclose(out2, ref_out2, atol=1e-5, rtol=1e-5)
    assert jnp.allclose(hT2, ref_hT2, atol=1e-5, rtol=1e-5)

    print("KERNEL_OK")
</pallas_src>

<mosaic_0001>
module attributes {stable_mosaic.version = 11 : i64} {
  func.func @_no_trade_rnn_kernel(%arg0: i32, %arg1: i32, %arg2: memref<22xf32, #tpu.memory_space<smem>>, %arg3: memref<2x8x128xf32, #tpu.memory_space<vmem>>, %arg4: memref<2x8x128xf32, #tpu.memory_space<vmem>>, %arg5: memref<2x8x128xf32, #tpu.memory_space<vmem>>, %arg6: memref<2x128xf32, #tpu.memory_space<vmem>>) attributes {dimension_semantics = [#tpu.dimension_semantics<parallel>, #tpu.dimension_semantics<arbitrary>], iteration_bounds = array<i64: 1, 1>, scalar_prefetch = 1 : i64, scratch_operands = 1 : i64, tpu.core_type = #tpu.core_type<tc>, window_params = [{transform_indices = @transform_0, window_bounds = array<i64: 2, 8, 128>}, {transform_indices = @transform_1, window_bounds = array<i64: 2, 8, 128>}, {transform_indices = @transform_2, window_bounds = array<i64: 2, 8, 128>}]} {
    %c0 = arith.constant 0 : index
    %0 = memref.load %arg2[%c0] : memref<22xf32, #tpu.memory_space<smem>>
    %c1 = arith.constant 1 : index
    %1 = memref.load %arg2[%c1] : memref<22xf32, #tpu.memory_space<smem>>
    %c2 = arith.constant 2 : index
    %2 = memref.load %arg2[%c2] : memref<22xf32, #tpu.memory_space<smem>>
    %c3 = arith.constant 3 : index
    %3 = memref.load %arg2[%c3] : memref<22xf32, #tpu.memory_space<smem>>
    %c4 = arith.constant 4 : index
    %4 = memref.load %arg2[%c4] : memref<22xf32, #tpu.memory_space<smem>>
    %c5 = arith.constant 5 : index
    %5 = memref.load %arg2[%c5] : memref<22xf32, #tpu.memory_space<smem>>
    %c6 = arith.constant 6 : index
    %6 = memref.load %arg2[%c6] : memref<22xf32, #tpu.memory_space<smem>>
    %c7 = arith.constant 7 : index
    %7 = memref.load %arg2[%c7] : memref<22xf32, #tpu.memory_space<smem>>
    %c8 = arith.constant 8 : index
    %8 = memref.load %arg2[%c8] : memref<22xf32, #tpu.memory_space<smem>>
    %c9 = arith.constant 9 : index
    %9 = memref.load %arg2[%c9] : memref<22xf32, #tpu.memory_space<smem>>
    %c10 = arith.constant 10 : index
    %10 = memref.load %arg2[%c10] : memref<22xf32, #tpu.memory_space<smem>>
    %c11 = arith.constant 11 : index
    %11 = memref.load %arg2[%c11] : memref<22xf32, #tpu.memory_space<smem>>
    %c12 = arith.constant 12 : index
    %12 = memref.load %arg2[%c12] : memref<22xf32, #tpu.memory_space<smem>>
    %c13 = arith.constant 13 : index
    %13 = memref.load %arg2[%c13] : memref<22xf32, #tpu.memory_space<smem>>
    %c14 = arith.constant 14 : index
    %14 = memref.load %arg2[%c14] : memref<22xf32, #tpu.memory_space<smem>>
    %c15 = arith.constant 15 : index
    %15 = memref.load %arg2[%c15] : memref<22xf32, #tpu.memory_space<smem>>
    %c16 = arith.constant 16 : index
    %16 = memref.load %arg2[%c16] : memref<22xf32, #tpu.memory_space<smem>>
    %c17 = arith.constant 17 : index
    %17 = memref.load %arg2[%c17] : memref<22xf32, #tpu.memory_space<smem>>
    %c18 = arith.constant 18 : index
    %18 = memref.load %arg2[%c18] : memref<22xf32, #tpu.memory_space<smem>>
    %c19 = arith.constant 19 : index
    %19 = memref.load %arg2[%c19] : memref<22xf32, #tpu.memory_space<smem>>
    %c20 = arith.constant 20 : index
    %20 = memref.load %arg2[%c20] : memref<22xf32, #tpu.memory_space<smem>>
    %c21 = arith.constant 21 : index
    %21 = memref.load %arg2[%c21] : memref<22xf32, #tpu.memory_space<smem>>
    %c0_i32 = arith.constant 0 : i32
    %22 = arith.cmpi eq, %arg1, %c0_i32 : i32
    %23 = arith.extui %22 : i1 to i32
    %c0_i32_0 = arith.constant 0 : i32
    %24 = arith.cmpi ne, %23, %c0_i32_0 : i32
    scf.if %24 {
      %cst_282 = arith.constant 0.000000e+00 : f32
      %1125 = vector.broadcast %cst_282 : f32 to vector<2x128xf32>
      %c0_283 = arith.constant 0 : index
      %c0_284 = arith.constant 0 : index
      %1126 = vector.load %arg6[%c0_283, %c0_284] : memref<2x128xf32, #tpu.memory_space<vmem>>, vector<2x128xf32>
      tpu.vector_store %arg6[%c0_283, %c0_284], %1125 {strides = array<i32>} : memref<2x128xf32, #tpu.memory_space<vmem>>, vector<2x128xf32>,
    } else {
    }
    %c0_1 = arith.constant 0 : index
    %c0_2 = arith.constant 0 : index
    %25 = vector.load %arg6[%c0_1, %c0_2] : memref<2x128xf32, #tpu.memory_space<vmem>>, vector<1x128xf32>
    %c1_3 = arith.constant 1 : index
    %c0_4 = arith.constant 0 : index
    %26 = vector.load %arg6[%c1_3, %c0_4] : memref<2x128xf32, #tpu.memory_space<vmem>>, vector<1x128xf32>
    %cst = arith.constant 1.000000e+00 : f32
    %c0_i32_5 = arith.constant 0 : i32
    %c0_6 = arith.constant 0 : index
    %27 = arith.index_cast %c0_i32_5 : i32 to index
    %c0_7 = arith.constant 0 : index
    %28 = vector.load %arg4[%c0_6, %27, %c0_7] : memref<2x8x128xf32, #tpu.memory_space<vmem>>, vector<1x1x128xf32>
    %29 = vector.shape_cast %28 : vector<1x1x128xf32> to vector<1x128xf32>
    %c1_8 = arith.constant 1 : index
    %30 = arith.index_cast %c0_i32_5 : i32 to index
    %c0_9 = arith.constant 0 : index
    %31 = vector.load %arg4[%c1_8, %30, %c0_9] : memref<2x8x128xf32, #tpu.memory_space<vmem>>, vector<1x1x128xf32>
    %32 = vector.shape_cast %31 : vector<1x1x128xf32> to vector<1x128xf32>
    %c0_10 = arith.constant 0 : index
    %33 = arith.index_cast %c0_i32_5 : i32 to index
    %c0_11 = arith.constant 0 : index
    %34 = vector.load %arg3[%c0_10, %33, %c0_11] : memref<2x8x128xf32, #tpu.memory_space<vmem>>, vector<1x1x128xf32>
    %35 = vector.shape_cast %34 : vector<1x1x128xf32> to vector<1x128xf32>
    %c1_12 = arith.constant 1 : index
    %36 = arith.index_cast %c0_i32_5 : i32 to index
    %c0_13 = arith.constant 0 : index
    %37 = vector.load %arg3[%c1_12, %36, %c0_13] : memref<2x8x128xf32, #tpu.memory_space<vmem>>, vector<1x1x128xf32>
    %38 = vector.shape_cast %37 : vector<1x1x128xf32> to vector<1x128xf32>
    %39 = arith.mulf %25, %29 : vector<1x128xf32>
    %40 = arith.mulf %26, %32 : vector<1x128xf32>
    %41 = arith.addf %39, %40 : vector<1x128xf32>
    %42 = vector.broadcast %cst : f32 to vector<1x128xf32>
    %43 = arith.addf %42, %41 : vector<1x128xf32>
    %44 = tpu.reciprocal %43 : vector<1x128xf32> -> vector<1x128xf32>
    %45 = vector.broadcast %cst : f32 to vector<1x128xf32>
    %46 = arith.addf %45, %29 : vector<1x128xf32>
    %47 = arith.mulf %25, %46 : vector<1x128xf32>
    %48 = arith.mulf %47, %44 : vector<1x128xf32>
    %49 = vector.broadcast %cst : f32 to vector<1x128xf32>
    %50 = arith.addf %49, %32 : vector<1x128xf32>
    %51 = arith.mulf %26, %50 : vector<1x128xf32>
    %52 = arith.mulf %51, %44 : vector<1x128xf32>
    %53 = vector.broadcast %2 : f32 to vector<1x128xf32>
    %54 = arith.subf %52, %53 : vector<1x128xf32>
    %55 = vector.broadcast %0 : f32 to vector<1x128xf32>
    %56 = arith.mulf %54, %55 : vector<1x128xf32>
    %cst_14 = arith.constant 0.000000e+00 : f32
    %57 = vector.broadcast %cst_14 : f32 to vector<1x128xf32>
    %58 = arith.maximumf %56, %57 : vector<1x128xf32>
    %cst_15 = arith.constant 0.000000e+00 : f32
    %59 = vector.broadcast %cst_15 : f32 to vector<1x128xf32>
    %60 = arith.subf %59, %58 : vector<1x128xf32>
    %61 = vector.broadcast %3 : f32 to vector<1x128xf32>
    %62 = arith.addf %60, %61 : vector<1x128xf32>
    %cst_16 = arith.constant 0.000000e+00 : f32
    %63 = vector.broadcast %cst_16 : f32 to vector<1x128xf32>
    %64 = arith.maximumf %62, %63 : vector<1x128xf32>
    %cst_17 = arith.constant 0.000000e+00 : f32
    %65 = vector.broadcast %cst_17 : f32 to vector<1x128xf32>
    %66 = arith.subf %65, %64 : vector<1x128xf32>
    %67 = vector.broadcast %4 : f32 to vector<1x128xf32>
    %68 = arith.addf %66, %67 : vector<1x128xf32>
    %69 = vector.broadcast %5 : f32 to vector<1x128xf32>
    %70 = arith.subf %52, %69 : vector<1x128xf32>
    %71 = vector.broadcast %0 : f32 to vector<1x128xf32>
    %72 = arith.mulf %70, %71 : vector<1x128xf32>
    %cst_18 = arith.constant 0.000000e+00 : f32
    %73 = vector.broadcast %cst_18 : f32 to vector<1x128xf32>
    %74 = arith.maximumf %72, %73 : vector<1x128xf32>
    %cst_19 = arith.constant 0.000000e+00 : f32
    %75 = vector.broadcast %cst_19 : f32 to vector<1x128xf32>
    %76 = arith.subf %75, %74 : vector<1x128xf32>
    %77 = vector.broadcast %6 : f32 to vector<1x128xf32>
    %78 = arith.addf %76, %77 : vector<1x128xf32>
    %cst_20 = arith.constant 0.000000e+00 : f32
    %79 = vector.broadcast %cst_20 : f32 to vector<1x128xf32>
    %80 = arith.maximumf %78, %79 : vector<1x128xf32>
    %cst_21 = arith.constant 0.000000e+00 : f32
    %81 = vector.broadcast %cst_21 : f32 to vector<1x128xf32>
    %82 = arith.subf %81, %80 : vector<1x128xf32>
    %83 = vector.broadcast %7 : f32 to vector<1x128xf32>
    %84 = arith.addf %82, %83 : vector<1x128xf32>
    %85 = vector.broadcast %8 : f32 to vector<1x128xf32>
    %86 = arith.subf %48, %85 : vector<1x128xf32>
    %87 = vector.broadcast %1 : f32 to vector<1x128xf32>
    %88 = arith.mulf %86, %87 : vector<1x128xf32>
    %cst_22 = arith.constant 0.000000e+00 : f32
    %89 = vector.broadcast %cst_22 : f32 to vector<1x128xf32>
    %90 = arith.maximumf %88, %89 : vector<1x128xf32>
    %cst_23 = arith.constant 0.000000e+00 : f32
    %91 = vector.broadcast %cst_23 : f32 to vector<1x128xf32>
    %92 = arith.subf %91, %90 : vector<1x128xf32>
    %93 = vector.broadcast %9 : f32 to vector<1x128xf32>
    %94 = arith.addf %92, %93 : vector<1x128xf32>
    %cst_24 = arith.constant 0.000000e+00 : f32
    %95 = vector.broadcast %cst_24 : f32 to vector<1x128xf32>
    %96 = arith.maximumf %94, %95 : vector<1x128xf32>
    %cst_25 = arith.constant 0.000000e+00 : f32
    %97 = vector.broadcast %cst_25 : f32 to vector<1x128xf32>
    %98 = arith.subf %97, %96 : vector<1x128xf32>
    %99 = vector.broadcast %10 : f32 to vector<1x128xf32>
    %100 = arith.addf %98, %99 : vector<1x128xf32>
    %101 = vector.broadcast %11 : f32 to vector<1x128xf32>
    %102 = arith.subf %48, %101 : vector<1x128xf32>
    %103 = vector.broadcast %1 : f32 to vector<1x128xf32>
    %104 = arith.mulf %102, %103 : vector<1x128xf32>
    %cst_26 = arith.constant 0.000000e+00 : f32
    %105 = vector.broadcast %cst_26 : f32 to vector<1x128xf32>
    %106 = arith.maximumf %104, %105 : vector<1x128xf32>
    %cst_27 = arith.constant 0.000000e+00 : f32
    %107 = vector.broadcast %cst_27 : f32 to vector<1x128xf32>
    %108 = arith.subf %107, %106 : vector<1x128xf32>
    %109 = vector.broadcast %12 : f32 to vector<1x128xf32>
    %110 = arith.addf %108, %109 : vector<1x128xf32>
    %cst_28 = arith.constant 0.000000e+00 : f32
    %111 = vector.broadcast %cst_28 : f32 to vector<1x128xf32>
    %112 = arith.maximumf %110, %111 : vector<1x128xf32>
    %cst_29 = arith.constant 0.000000e+00 : f32
    %113 = vector.broadcast %cst_29 : f32 to vector<1x128xf32>
    %114 = arith.subf %113, %112 : vector<1x128xf32>
    %115 = vector.broadcast %13 : f32 to vector<1x128xf32>
    %116 = arith.addf %114, %115 : vector<1x128xf32>
    %117 = vector.broadcast %14 : f32 to vector<1x128xf32>
    %118 = arith.mulf %117, %35 : vector<1x128xf32>
    %119 = vector.broadcast %16 : f32 to vector<1x128xf32>
    %120 = arith.mulf %119, %48 : vector<1x128xf32>
    %121 = arith.addf %118, %120 : vector<1x128xf32>
    %122 = arith.subf %121, %68 : vector<1x128xf32>
    %cst_30 = arith.constant 0.000000e+00 : f32
    %123 = vector.broadcast %cst_30 : f32 to vector<1x128xf32>
    %124 = arith.maximumf %122, %123 : vector<1x128xf32>
    %125 = vector.broadcast %18 : f32 to vector<1x128xf32>
    %126 = arith.mulf %125, %124 : vector<1x128xf32>
    %127 = arith.addf %126, %84 : vector<1x128xf32>
    %128 = arith.subf %127, %68 : vector<1x128xf32>
    %cst_31 = arith.constant 0.000000e+00 : f32
    %129 = vector.broadcast %cst_31 : f32 to vector<1x128xf32>
    %130 = arith.maximumf %128, %129 : vector<1x128xf32>
    %131 = vector.broadcast %20 : f32 to vector<1x128xf32>
    %132 = arith.mulf %131, %130 : vector<1x128xf32>
    %133 = arith.addf %132, %84 : vector<1x128xf32>
    %134 = vector.broadcast %15 : f32 to vector<1x128xf32>
    %135 = arith.mulf %134, %38 : vector<1x128xf32>
    %136 = vector.broadcast %17 : f32 to vector<1x128xf32>
    %137 = arith.mulf %136, %52 : vector<1x128xf32>
    %138 = arith.addf %135, %137 : vector<1x128xf32>
    %139 = arith.subf %138, %100 : vector<1x128xf32>
    %cst_32 = arith.constant 0.000000e+00 : f32
    %140 = vector.broadcast %cst_32 : f32 to vector<1x128xf32>
    %141 = arith.maximumf %139, %140 : vector<1x128xf32>
    %142 = vector.broadcast %19 : f32 to vector<1x128xf32>
    %143 = arith.mulf %142, %141 : vector<1x128xf32>
    %144 = arith.addf %143, %116 : vector<1x128xf32>
    %145 = arith.subf %144, %100 : vector<1x128xf32>
    %cst_33 = arith.constant 0.000000e+00 : f32
    %146 = vector.broadcast %cst_33 : f32 to vector<1x128xf32>
    %147 = arith.maximumf %145, %146 : vector<1x128xf32>
    %148 = vector.broadcast %21 : f32 to vector<1x128xf32>
    %149 = arith.mulf %148, %147 : vector<1x128xf32>
    %150 = arith.addf %149, %116 : vector<1x128xf32>
    %c0_i32_34 = arith.constant 0 : i32
    %151 = arith.cmpi eq, %arg1, %c0_i32_34 : i32
    %c0_i32_35 = arith.constant 0 : i32
    %152 = arith.cmpi eq, %c0_i32_5, %c0_i32_35 : i32
    %153 = arith.andi %151, %152 : i1
    %154 = arith.select %153, %35, %133 : vector<1x128xf32>
    %155 = arith.select %153, %38, %150 : vector<1x128xf32>
    %c0_36 = arith.constant 0 : index
    %156 = arith.index_cast %c0_i32_5 : i32 to index
    %c0_37 = arith.constant 0 : index
    %157 = vector.load %arg5[%c0_36, %156, %c0_37] : memref<2x8x128xf32, #tpu.memory_space<vmem>>, vector<1x1x128xf32>
    %158 = vector.shape_cast %157 : vector<1x1x128xf32> to vector<1x128xf32>
    %159 = vector.shape_cast %154 : vector<1x128xf32> to vector<1x1x128xf32>
    tpu.vector_store %arg5[%c0_36, %156, %c0_37], %159 {strides = array<i32>} : memref<2x8x128xf32, #tpu.memory_space<vmem>>, vector<1x1x128xf32>,
    %c1_38 = arith.constant 1 : index
    %160 = arith.index_cast %c0_i32_5 : i32 to index
    %c0_39 = arith.constant 0 : index
    %161 = vector.load %arg5[%c1_38, %160, %c0_39] : memref<2x8x128xf32, #tpu.memory_space<vmem>>, vector<1x1x128xf32>
    %162 = vector.shape_cast %161 : vector<1x1x128xf32> to vector<1x128xf32>
    %163 = vector.shape_cast %155 : vector<1x128xf32> to vector<1x1x128xf32>
    tpu.vector_store %arg5[%c1_38, %160, %c0_39], %163 {strides = array<i32>} : memref<2x8x128xf32, #tpu.memory_space<vmem>>, vector<1x1x128xf32>,
    %c1_i32 = arith.constant 1 : i32
    %c0_40 = arith.constant 0 : index
    %164 = arith.index_cast %c1_i32 : i32 to index
    %c0_41 = arith.constant 0 : index
    %165 = vector.load %arg4[%c0_40, %164, %c0_41] : memref<2x8x128xf32, #tpu.memory_space<vmem>>, vector<1x1x128xf32>
    %166 = vector.shape_cast %165 : vector<1x1x128xf32> to vector<1x128xf32>
    %c1_42 = arith.constant 1 : index
    %167 = arith.index_cast %c1_i32 : i32 to index
    %c0_43 = arith.constant 0 : index
    %168 = vector.load %arg4[%c1_42, %167, %c0_43] : memref<2x8x128xf32, #tpu.memory_space<vmem>>, vector<1x1x128xf32>
    %169 = vector.shape_cast %168 : vector<1x1x128xf32> to vector<1x128xf32>
    %c0_44 = arith.constant 0 : index
    %170 = arith.index_cast %c1_i32 : i32 to index
    %c0_45 = arith.constant 0 : index
    %171 = vector.load %arg3[%c0_44, %170, %c0_45] : memref<2x8x128xf32, #tpu.memory_space<vmem>>, vector<1x1x128xf32>
    %172 = vector.shape_cast %171 : vector<1x1x128xf32> to vector<1x128xf32>
    %c1_46 = arith.constant 1 : index
    %173 = arith.index_cast %c1_i32 : i32 to index
    %c0_47 = arith.constant 0 : index
    %174 = vector.load %arg3[%c1_46, %173, %c0_47] : memref<2x8x128xf32, #tpu.memory_space<vmem>>, vector<1x1x128xf32>
    %175 = vector.shape_cast %174 : vector<1x1x128xf32> to vector<1x128xf32>
    %176 = arith.mulf %154, %166 : vector<1x128xf32>
    %177 = arith.mulf %155, %169 : vector<1x128xf32>
    %178 = arith.addf %176, %177 : vector<1x128xf32>
    %179 = vector.broadcast %cst : f32 to vector<1x128xf32>
    %180 = arith.addf %179, %178 : vector<1x128xf32>
    %181 = tpu.reciprocal %180 : vector<1x128xf32> -> vector<1x128xf32>
    %182 = vector.broadcast %cst : f32 to vector<1x128xf32>
    %183 = arith.addf %182, %166 : vector<1x128xf32>
    %184 = arith.mulf %154, %183 : vector<1x128xf32>
    %185 = arith.mulf %184, %181 : vector<1x128xf32>
    %186 = vector.broadcast %cst : f32 to vector<1x128xf32>
    %187 = arith.addf %186, %169 : vector<1x128xf32>
    %188 = arith.mulf %155, %187 : vector<1x128xf32>
    %189 = arith.mulf %188, %181 : vector<1x128xf32>
    %190 = vector.broadcast %2 : f32 to vector<1x128xf32>
    %191 = arith.subf %189, %190 : vector<1x128xf32>
    %192 = vector.broadcast %0 : f32 to vector<1x128xf32>
    %193 = arith.mulf %191, %192 : vector<1x128xf32>
    %cst_48 = arith.constant 0.000000e+00 : f32
    %194 = vector.broadcast %cst_48 : f32 to vector<1x128xf32>
    %195 = arith.maximumf %193, %194 : vector<1x128xf32>
    %cst_49 = arith.constant 0.000000e+00 : f32
    %196 = vector.broadcast %cst_49 : f32 to vector<1x128xf32>
    %197 = arith.subf %196, %195 : vector<1x128xf32>
    %198 = vector.broadcast %3 : f32 to vector<1x128xf32>
    %199 = arith.addf %197, %198 : vector<1x128xf32>
    %cst_50 = arith.constant 0.000000e+00 : f32
    %200 = vector.broadcast %cst_50 : f32 to vector<1x128xf32>
    %201 = arith.maximumf %199, %200 : vector<1x128xf32>
    %cst_51 = arith.constant 0.000000e+00 : f32
    %202 = vector.broadcast %cst_51 : f32 to vector<1x128xf32>
    %203 = arith.subf %202, %201 : vector<1x128xf32>
    %204 = vector.broadcast %4 : f32 to vector<1x128xf32>
    %205 = arith.addf %203, %204 : vector<1x128xf32>
    %206 = vector.broadcast %5 : f32 to vector<1x128xf32>
    %207 = arith.subf %189, %206 : vector<1x128xf32>
    %208 = vector.broadcast %0 : f32 to vector<1x128xf32>
    %209 = arith.mulf %207, %208 : vector<1x128xf32>
    %cst_52 = arith.constant 0.000000e+00 : f32
    %210 = vector.broadcast %cst_52 : f32 to vector<1x128xf32>
    %211 = arith.maximumf %209, %210 : vector<1x128xf32>
    %cst_53 = arith.constant 0.000000e+00 : f32
    %212 = vector.broadcast %cst_53 : f32 to vector<1x128xf32>
    %213 = arith.subf %212, %211 : vector<1x128xf32>
    %214 = vector.broadcast %6 : f32 to vector<1x128xf32>
    %215 = arith.addf %213, %214 : vector<1x128xf32>
    %cst_54 = arith.constant 0.000000e+00 : f32
    %216 = vector.broadcast %cst_54 : f32 to vector<1x128xf32>
    %217 = arith.maximumf %215, %216 : vector<1x128xf32>
    %cst_55 = arith.constant 0.000000e+00 : f32
    %218 = vector.broadcast %cst_55 : f32 to vector<1x128xf32>
    %219 = arith.subf %218, %217 : vector<1x128xf32>
    %220 = vector.broadcast %7 : f32 to vector<1x128xf32>
    %221 = arith.addf %219, %220 : vector<1x128xf32>
    %222 = vector.broadcast %8 : f32 to vector<1x128xf32>
    %223 = arith.subf %185, %222 : vector<1x128xf32>
    %224 = vector.broadcast %1 : f32 to vector<1x128xf32>
    %225 = arith.mulf %223, %224 : vector<1x128xf32>
    %cst_56 = arith.constant 0.000000e+00 : f32
    %226 = vector.broadcast %cst_56 : f32 to vector<1x128xf32>
    %227 = arith.maximumf %225, %226 : vector<1x128xf32>
    %cst_57 = arith.constant 0.000000e+00 : f32
    %228 = vector.broadcast %cst_57 : f32 to vector<1x128xf32>
    %229 = arith.subf %228, %227 : vector<1x128xf32>
    %230 = vector.broadcast %9 : f32 to vector<1x128xf32>
    %231 = arith.addf %229, %230 : vector<1x128xf32>
    %cst_58 = arith.constant 0.000000e+00 : f32
    %232 = vector.broadcast %cst_58 : f32 to vector<1x128xf32>
    %233 = arith.maximumf %231, %232 : vector<1x128xf32>
    %cst_59 = arith.constant 0.000000e+00 : f32
    %234 = vector.broadcast %cst_59 : f32 to vector<1x128xf32>
    %235 = arith.subf %234, %233 : vector<1x128xf32>
    %236 = vector.broadcast %10 : f32 to vector<1x128xf32>
    %237 = arith.addf %235, %236 : vector<1x128xf32>
    %238 = vector.broadcast %11 : f32 to vector<1x128xf32>
    %239 = arith.subf %185, %238 : vector<1x128xf32>
    %240 = vector.broadcast %1 : f32 to vector<1x128xf32>
    %241 = arith.mulf %239, %240 : vector<1x128xf32>
    %cst_60 = arith.constant 0.000000e+00 : f32
    %242 = vector.broadcast %cst_60 : f32 to vector<1x128xf32>
    %243 = arith.maximumf %241, %242 : vector<1x128xf32>
    %cst_61 = arith.constant 0.000000e+00 : f32
    %244 = vector.broadcast %cst_61 : f32 to vector<1x128xf32>
    %245 = arith.subf %244, %243 : vector<1x128xf32>
    %246 = vector.broadcast %12 : f32 to vector<1x128xf32>
    %247 = arith.addf %245, %246 : vector<1x128xf32>
    %cst_62 = arith.constant 0.000000e+00 : f32
    %248 = vector.broadcast %cst_62 : f32 to vector<1x128xf32>
    %249 = arith.maximumf %247, %248 : vector<1x128xf32>
    %cst_63 = arith.constant 0.000000e+00 : f32
    %250 = vector.broadcast %cst_63 : f32 to vector<1x128xf32>
    %251 = arith.subf %250, %249 : vector<1x128xf32>
    %252 = vector.broadcast %13 : f32 to vector<1x128xf32>
    %253 = arith.addf %251, %252 : vector<1x128xf32>
    %254 = vector.broadcast %14 : f32 to vector<1x128xf32>
    %255 = arith.mulf %254, %172 : vector<1x128xf32>
    %256 = vector.broadcast %16 : f32 to vector<1x128xf32>
    %257 = arith.mulf %256, %185 : vector<1x128xf32>
    %258 = arith.addf %255, %257 : vector<1x128xf32>
    %259 = arith.subf %258, %205 : vector<1x128xf32>
    %cst_64 = arith.constant 0.000000e+00 : f32
    %260 = vector.broadcast %cst_64 : f32 to vector<1x128xf32>
    %261 = arith.maximumf %259, %260 : vector<1x128xf32>
    %262 = vector.broadcast %18 : f32 to vector<1x128xf32>
    %263 = arith.mulf %262, %261 : vector<1x128xf32>
    %264 = arith.addf %263, %221 : vector<1x128xf32>
    %265 = arith.subf %264, %205 : vector<1x128xf32>
    %cst_65 = arith.constant 0.000000e+00 : f32
    %266 = vector.broadcast %cst_65 : f32 to vector<1x128xf32>
    %267 = arith.maximumf %265, %266 : vector<1x128xf32>
    %268 = vector.broadcast %20 : f32 to vector<1x128xf32>
    %269 = arith.mulf %268, %267 : vector<1x128xf32>
    %270 = arith.addf %269, %221 : vector<1x128xf32>
    %271 = vector.broadcast %15 : f32 to vector<1x128xf32>
    %272 = arith.mulf %271, %175 : vector<1x128xf32>
    %273 = vector.broadcast %17 : f32 to vector<1x128xf32>
    %274 = arith.mulf %273, %189 : vector<1x128xf32>
    %275 = arith.addf %272, %274 : vector<1x128xf32>
    %276 = arith.subf %275, %237 : vector<1x128xf32>
    %cst_66 = arith.constant 0.000000e+00 : f32
    %277 = vector.broadcast %cst_66 : f32 to vector<1x128xf32>
    %278 = arith.maximumf %276, %277 : vector<1x128xf32>
    %279 = vector.broadcast %19 : f32 to vector<1x128xf32>
    %280 = arith.mulf %279, %278 : vector<1x128xf32>
    %281 = arith.addf %280, %253 : vector<1x128xf32>
    %282 = arith.subf %281, %237 : vector<1x128xf32>
    %cst_67 = arith.constant 0.000000e+00 : f32
    %283 = vector.broadcast %cst_67 : f32 to vector<1x128xf32>
    %284 = arith.maximumf %282, %283 : vector<1x128xf32>
    %285 = vector.broadcast %21 : f32 to vector<1x128xf32>
    %286 = arith.mulf %285, %284 : vector<1x128xf32>
    %287 = arith.addf %286, %253 : vector<1x128xf32>
    %c0_i32_68 = arith.constant 0 : i32
    %288 = arith.cmpi eq, %arg1, %c0_i32_68 : i32
    %c0_i32_69 = arith.constant 0 : i32
    %289 = arith.cmpi eq, %c1_i32, %c0_i32_69 : i32
    %290 = arith.andi %288, %289 : i1
    %291 = arith.select %290, %172, %270 : vector<1x128xf32>
    %292 = arith.select %290, %175, %287 : vector<1x128xf32>
    %c0_70 = arith.constant 0 : index
    %293 = arith.index_cast %c1_i32 : i32 to index
    %c0_71 = arith.constant 0 : index
    %294 = vector.load %arg5[%c0_70, %293, %c0_71] : memref<2x8x128xf32, #tpu.memory_space<vmem>>, vector<1x1x128xf32>
    %295 = vector.shape_cast %294 : vector<1x1x128xf32> to vector<1x128xf32>
    %296 = vector.shape_cast %291 : vector<1x128xf32> to vector<1x1x128xf32>
    tpu.vector_store %arg5[%c0_70, %293, %c0_71], %296 {strides = array<i32>} : memref<2x8x128xf32, #tpu.memory_space<vmem>>, vector<1x1x128xf32>,
    %c1_72 = arith.constant 1 : index
    %297 = arith.index_cast %c1_i32 : i32 to index
    %c0_73 = arith.constant 0 : index
    %298 = vector.load %arg5[%c1_72, %297, %c0_73] : memref<2x8x128xf32, #tpu.memory_space<vmem>>, vector<1x1x128xf32>
    %299 = vector.shape_cast %298 : vector<1x1x128xf32> to vector<1x128xf32>
    %300 = vector.shape_cast %292 : vector<1x128xf32> to vector<1x1x128xf32>
    tpu.vector_store %arg5[%c1_72, %297, %c0_73], %300 {strides = array<i32>} : memref<2x8x128xf32, #tpu.memory_space<vmem>>, vector<1x1x128xf32>,
    %c2_i32 = arith.constant 2 : i32
    %c0_74 = arith.constant 0 : index
    %301 = arith.index_cast %c2_i32 : i32 to index
    %c0_75 = arith.constant 0 : index
    %302 = vector.load %arg4[%c0_74, %301, %c0_75] : memref<2x8x128xf32, #tpu.memory_space<vmem>>, vector<1x1x128xf32>
    %303 = vector.shape_cast %302 : vector<1x1x128xf32> to vector<1x128xf32>
    %c1_76 = arith.constant 1 : index
    %304 = arith.index_cast %c2_i32 : i32 to index
    %c0_77 = arith.constant 0 : index
    %305 = vector.load %arg4[%c1_76, %304, %c0_77] : memref<2x8x128xf32, #tpu.memory_space<vmem>>, vector<1x1x128xf32>
    %306 = vector.shape_cast %305 : vector<1x1x128xf32> to vector<1x128xf32>
    %c0_78 = arith.constant 0 : index
    %307 = arith.index_cast %c2_i32 : i32 to index
    %c0_79 = arith.constant 0 : index
    %308 = vector.load %arg3[%c0_78, %307, %c0_79] : memref<2x8x128xf32, #tpu.memory_space<vmem>>, vector<1x1x128xf32>
    %309 = vector.shape_cast %308 : vector<1x1x128xf32> to vector<1x128xf32>
    %c1_80 = arith.constant 1 : index
    %310 = arith.index_cast %c2_i32 : i32 to index
    %c0_81 = arith.constant 0 : index
    %311 = vector.load %arg3[%c1_80, %310, %c0_81] : memref<2x8x128xf32, #tpu.memory_space<vmem>>, vector<1x1x128xf32>
    %312 = vector.shape_cast %311 : vector<1x1x128xf32> to vector<1x128xf32>
    %313 = arith.mulf %291, %303 : vector<1x128xf32>
    %314 = arith.mulf %292, %306 : vector<1x128xf32>
    %315 = arith.addf %313, %314 : vector<1x128xf32>
    %316 = vector.broadcast %cst : f32 to vector<1x128xf32>
    %317 = arith.addf %316, %315 : vector<1x128xf32>
    %318 = tpu.reciprocal %317 : vector<1x128xf32> -> vector<1x128xf32>
    %319 = vector.broadcast %cst : f32 to vector<1x128xf32>
    %320 = arith.addf %319, %303 : vector<1x128xf32>
    %321 = arith.mulf %291, %320 : vector<1x128xf32>
    %322 = arith.mulf %321, %318 : vector<1x128xf32>
    %323 = vector.broadcast %cst : f32 to vector<1x128xf32>
    %324 = arith.addf %323, %306 : vector<1x128xf32>
    %325 = arith.mulf %292, %324 : vector<1x128xf32>
    %326 = arith.mulf %325, %318 : vector<1x128xf32>
    %327 = vector.broadcast %2 : f32 to vector<1x128xf32>
    %328 = arith.subf %326, %327 : vector<1x128xf32>
    %329 = vector.broadcast %0 : f32 to vector<1x128xf32>
    %330 = arith.mulf %328, %329 : vector<1x128xf32>
    %cst_82 = arith.constant 0.000000e+00 : f32
    %331 = vector.broadcast %cst_82 : f32 to vector<1x128xf32>
    %332 = arith.maximumf %330, %331 : vector<1x128xf32>
    %cst_83 = arith.constant 0.000000e+00 : f32
    %333 = vector.broadcast %cst_83 : f32 to vector<1x128xf32>
    %334 = arith.subf %333, %332 : vector<1x128xf32>
    %335 = vector.broadcast %3 : f32 to vector<1x128xf32>
    %336 = arith.addf %334, %335 : vector<1x128xf32>
    %cst_84 = arith.constant 0.000000e+00 : f32
    %337 = vector.broadcast %cst_84 : f32 to vector<1x128xf32>
    %338 = arith.maximumf %336, %337 : vector<1x128xf32>
    %cst_85 = arith.constant 0.000000e+00 : f32
    %339 = vector.broadcast %cst_85 : f32 to vector<1x128xf32>
    %340 = arith.subf %339, %338 : vector<1x128xf32>
    %341 = vector.broadcast %4 : f32 to vector<1x128xf32>
    %342 = arith.addf %340, %341 : vector<1x128xf32>
    %343 = vector.broadcast %5 : f32 to vector<1x128xf32>
    %344 = arith.subf %326, %343 : vector<1x128xf32>
    %345 = vector.broadcast %0 : f32 to vector<1x128xf32>
    %346 = arith.mulf %344, %345 : vector<1x128xf32>
    %cst_86 = arith.constant 0.000000e+00 : f32
    %347 = vector.broadcast %cst_86 : f32 to vector<1x128xf32>
    %348 = arith.maximumf %346, %347 : vector<1x128xf32>
    %cst_87 = arith.constant 0.000000e+00 : f32
    %349 = vector.broadcast %cst_87 : f32 to vector<1x128xf32>
    %350 = arith.subf %349, %348 : vector<1x128xf32>
    %351 = vector.broadcast %6 : f32 to vector<1x128xf32>
    %352 = arith.addf %350, %351 : vector<1x128xf32>
    %cst_88 = arith.constant 0.000000e+00 : f32
    %353 = vector.broadcast %cst_88 : f32 to vector<1x128xf32>
    %354 = arith.maximumf %352, %353 : vector<1x128xf32>
    %cst_89 = arith.constant 0.000000e+00 : f32
    %355 = vector.broadcast %cst_89 : f32 to vector<1x128xf32>
    %356 = arith.subf %355, %354 : vector<1x128xf32>
    %357 = vector.broadcast %7 : f32 to vector<1x128xf32>
    %358 = arith.addf %356, %357 : vector<1x128xf32>
    %359 = vector.broadcast %8 : f32 to vector<1x128xf32>
    %360 = arith.subf %322, %359 : vector<1x128xf32>
    %361 = vector.broadcast %1 : f32 to vector<1x128xf32>
    %362 = arith.mulf %360, %361 : vector<1x128xf32>
    %cst_90 = arith.constant 0.000000e+00 : f32
    %363 = vector.broadcast %cst_90 : f32 to vector<1x128xf32>
    %364 = arith.maximumf %362, %363 : vector<1x128xf32>
    %cst_91 = arith.constant 0.000000e+00 : f32
    %365 = vector.broadcast %cst_91 : f32 to vector<1x128xf32>
    %366 = arith.subf %365, %364 : vector<1x128xf32>
    %367 = vector.broadcast %9 : f32 to vector<1x128xf32>
    %368 = arith.addf %366, %367 : vector<1x128xf32>
    %cst_92 = arith.constant 0.000000e+00 : f32
    %369 = vector.broadcast %cst_92 : f32 to vector<1x128xf32>
    %370 = arith.maximumf %368, %369 : vector<1x128xf32>
    %cst_93 = arith.constant 0.000000e+00 : f32
    %371 = vector.broadcast %cst_93 : f32 to vector<1x128xf32>
    %372 = arith.subf %371, %370 : vector<1x128xf32>
    %373 = vector.broadcast %10 : f32 to vector<1x128xf32>
    %374 = arith.addf %372, %373 : vector<1x128xf32>
    %375 = vector.broadcast %11 : f32 to vector<1x128xf32>
    %376 = arith.subf %322, %375 : vector<1x128xf32>
    %377 = vector.broadcast %1 : f32 to vector<1x128xf32>
    %378 = arith.mulf %376, %377 : vector<1x128xf32>
    %cst_94 = arith.constant 0.000000e+00 : f32
    %379 = vector.broadcast %cst_94 : f32 to vector<1x128xf32>
    %380 = arith.maximumf %378, %379 : vector<1x128xf32>
    %cst_95 = arith.constant 0.000000e+00 : f32
    %381 = vector.broadcast %cst_95 : f32 to vector<1x128xf32>
    %382 = arith.subf %381, %380 : vector<1x128xf32>
    %383 = vector.broadcast %12 : f32 to vector<1x128xf32>
    %384 = arith.addf %382, %383 : vector<1x128xf32>
    %cst_96 = arith.constant 0.000000e+00 : f32
    %385 = vector.broadcast %cst_96 : f32 to vector<1x128xf32>
    %386 = arith.maximumf %384, %385 : vector<1x128xf32>
    %cst_97 = arith.constant 0.000000e+00 : f32
    %387 = vector.broadcast %cst_97 : f32 to vector<1x128xf32>
    %388 = arith.subf %387, %386 : vector<1x128xf32>
    %389 = vector.broadcast %13 : f32 to vector<1x128xf32>
    %390 = arith.addf %388, %389 : vector<1x128xf32>
    %391 = vector.broadcast %14 : f32 to vector<1x128xf32>
    %392 = arith.mulf %391, %309 : vector<1x128xf32>
    %393 = vector.broadcast %16 : f32 to vector<1x128xf32>
    %394 = arith.mulf %393, %322 : vector<1x128xf32>
    %395 = arith.addf %392, %394 : vector<1x128xf32>
    %396 = arith.subf %395, %342 : vector<1x128xf32>
    %cst_98 = arith.constant 0.000000e+00 : f32
    %397 = vector.broadcast %cst_98 : f32 to vector<1x128xf32>
    %398 = arith.maximumf %396, %397 : vector<1x128xf32>
    %399 = vector.broadcast %18 : f32 to vector<1x128xf32>
    %400 = arith.mulf %399, %398 : vector<1x128xf32>
    %401 = arith.addf %400, %358 : vector<1x128xf32>
    %402 = arith.subf %401, %342 : vector<1x128xf32>
    %cst_99 = arith.constant 0.000000e+00 : f32
    %403 = vector.broadcast %cst_99 : f32 to vector<1x128xf32>
    %404 = arith.maximumf %402, %403 : vector<1x128xf32>
    %405 = vector.broadcast %20 : f32 to vector<1x128xf32>
    %406 = arith.mulf %405, %404 : vector<1x128xf32>
    %407 = arith.addf %406, %358 : vector<1x128xf32>
    %408 = vector.broadcast %15 : f32 to vector<1x128xf32>
    %409 = arith.mulf %408, %312 : vector<1x128xf32>
    %410 = vector.broadcast %17 : f32 to vector<1x128xf32>
    %411 = arith.mulf %410, %326 : vector<1x128xf32>
    %412 = arith.addf %409, %411 : vector<1x128xf32>
    %413 = arith.subf %412, %374 : vector<1x128xf32>
    %cst_100 = arith.constant 0.000000e+00 : f32
    %414 = vector.broadcast %cst_100 : f32 to vector<1x128xf32>
    %415 = arith.maximumf %413, %414 : vector<1x128xf32>
    %416 = vector.broadcast %19 : f32 to vector<1x128xf32>
    %417 = arith.mulf %416, %415 : vector<1x128xf32>
    %418 = arith.addf %417, %390 : vector<1x128xf32>
    %419 = arith.subf %418, %374 : vector<1x128xf32>
    %cst_101 = arith.constant 0.000000e+00 : f32
    %420 = vector.broadcast %cst_101 : f32 to vector<1x128xf32>
    %421 = arith.maximumf %419, %420 : vector<1x128xf32>
    %422 = vector.broadcast %21 : f32 to vector<1x128xf32>
    %423 = arith.mulf %422, %421 : vector<1x128xf32>
    %424 = arith.addf %423, %390 : vector<1x128xf32>
    %c0_i32_102 = arith.constant 0 : i32
    %425 = arith.cmpi eq, %arg1, %c0_i32_102 : i32
    %c0_i32_103 = arith.constant 0 : i32
    %426 = arith.cmpi eq, %c2_i32, %c0_i32_103 : i32
    %427 = arith.andi %425, %426 : i1
    %428 = arith.select %427, %309, %407 : vector<1x128xf32>
    %429 = arith.select %427, %312, %424 : vector<1x128xf32>
    %c0_104 = arith.constant 0 : index
    %430 = arith.index_cast %c2_i32 : i32 to index
    %c0_105 = arith.constant 0 : index
    %431 = vector.load %arg5[%c0_104, %430, %c0_105] : memref<2x8x128xf32, #tpu.memory_space<vmem>>, vector<1x1x128xf32>
    %432 = vector.shape_cast %431 : vector<1x1x128xf32> to vector<1x128xf32>
    %433 = vector.shape_cast %428 : vector<1x128xf32> to vector<1x1x128xf32>
    tpu.vector_store %arg5[%c0_104, %430, %c0_105], %433 {strides = array<i32>} : memref<2x8x128xf32, #tpu.memory_space<vmem>>, vector<1x1x128xf32>,
    %c1_106 = arith.constant 1 : index
    %434 = arith.index_cast %c2_i32 : i32 to index
    %c0_107 = arith.constant 0 : index
    %435 = vector.load %arg5[%c1_106, %434, %c0_107] : memref<2x8x128xf32, #tpu.memory_space<vmem>>, vector<1x1x128xf32>
    %436 = vector.shape_cast %435 : vector<1x1x128xf32> to vector<1x128xf32>
    %437 = vector.shape_cast %429 : vector<1x128xf32> to vector<1x1x128xf32>
    tpu.vector_store %arg5[%c1_106, %434, %c0_107], %437 {strides = array<i32>} : memref<2x8x128xf32, #tpu.memory_space<vmem>>, vector<1x1x128xf32>,
    %c3_i32 = arith.constant 3 : i32
    %c0_108 = arith.constant 0 : index
    %438 = arith.index_cast %c3_i32 : i32 to index
    %c0_109 = arith.constant 0 : index
    %439 = vector.load %arg4[%c0_108, %438, %c0_109] : memref<2x8x128xf32, #tpu.memory_space<vmem>>, vector<1x1x128xf32>
    %440 = vector.shape_cast %439 : vector<1x1x128xf32> to vector<1x128xf32>
    %c1_110 = arith.constant 1 : index
    %441 = arith.index_cast %c3_i32 : i32 to index
    %c0_111 = arith.constant 0 : index
    %442 = vector.load %arg4[%c1_110, %441, %c0_111] : memref<2x8x128xf32, #tpu.memory_space<vmem>>, vector<1x1x128xf32>
    %443 = vector.shape_cast %442 : vector<1x1x128xf32> to vector<1x128xf32>
    %c0_112 = arith.constant 0 : index
    %444 = arith.index_cast %c3_i32 : i32 to index
    %c0_113 = arith.constant 0 : index
    %445 = vector.load %arg3[%c0_112, %444, %c0_113] : memref<2x8x128xf32, #tpu.memory_space<vmem>>, vector<1x1x128xf32>
    %446 = vector.shape_cast %445 : vector<1x1x128xf32> to vector<1x128xf32>
    %c1_114 = arith.constant 1 : index
    %447 = arith.index_cast %c3_i32 : i32 to index
    %c0_115 = arith.constant 0 : index
    %448 = vector.load %arg3[%c1_114, %447, %c0_115] : memref<2x8x128xf32, #tpu.memory_space<vmem>>, vector<1x1x128xf32>
    %449 = vector.shape_cast %448 : vector<1x1x128xf32> to vector<1x128xf32>
    %450 = arith.mulf %428, %440 : vector<1x128xf32>
    %451 = arith.mulf %429, %443 : vector<1x128xf32>
    %452 = arith.addf %450, %451 : vector<1x128xf32>
    %453 = vector.broadcast %cst : f32 to vector<1x128xf32>
    %454 = arith.addf %453, %452 : vector<1x128xf32>
    %455 = tpu.reciprocal %454 : vector<1x128xf32> -> vector<1x128xf32>
    %456 = vector.broadcast %cst : f32 to vector<1x128xf32>
    %457 = arith.addf %456, %440 : vector<1x128xf32>
    %458 = arith.mulf %428, %457 : vector<1x128xf32>
    %459 = arith.mulf %458, %455 : vector<1x128xf32>
    %460 = vector.broadcast %cst : f32 to vector<1x128xf32>
    %461 = arith.addf %460, %443 : vector<1x128xf32>
    %462 = arith.mulf %429, %461 : vector<1x128xf32>
    %463 = arith.mulf %462, %455 : vector<1x128xf32>
    %464 = vector.broadcast %2 : f32 to vector<1x128xf32>
    %465 = arith.subf %463, %464 : vector<1x128xf32>
    %466 = vector.broadcast %0 : f32 to vector<1x128xf32>
    %467 = arith.mulf %465, %466 : vector<1x128xf32>
    %cst_116 = arith.constant 0.000000e+00 : f32
    %468 = vector.broadcast %cst_116 : f32 to vector<1x128xf32>
    %469 = arith.maximumf %467, %468 : vector<1x128xf32>
    %cst_117 = arith.constant 0.000000e+00 : f32
    %470 = vector.broadcast %cst_117 : f32 to vector<1x128xf32>
    %471 = arith.subf %470, %469 : vector<1x128xf32>
    %472 = vector.broadcast %3 : f32 to vector<1x128xf32>
    %473 = arith.addf %471, %472 : vector<1x128xf32>
    %cst_118 = arith.constant 0.000000e+00 : f32
    %474 = vector.broadcast %cst_118 : f32 to vector<1x128xf32>
    %475 = arith.maximumf %473, %474 : vector<1x128xf32>
    %cst_119 = arith.constant 0.000000e+00 : f32
    %476 = vector.broadcast %cst_119 : f32 to vector<1x128xf32>
    %477 = arith.subf %476, %475 : vector<1x128xf32>
    %478 = vector.broadcast %4 : f32 to vector<1x128xf32>
    %479 = arith.addf %477, %478 : vector<1x128xf32>
    %480 = vector.broadcast %5 : f32 to vector<1x128xf32>
    %481 = arith.subf %463, %480 : vector<1x128xf32>
    %482 = vector.broadcast %0 : f32 to vector<1x128xf32>
    %483 = arith.mulf %481, %482 : vector<1x128xf32>
    %cst_120 = arith.constant 0.000000e+00 : f32
    %484 = vector.broadcast %cst_120 : f32 to vector<1x128xf32>
    %485 = arith.maximumf %483, %484 : vector<1x128xf32>
    %cst_121 = arith.constant 0.000000e+00 : f32
    %486 = vector.broadcast %cst_121 : f32 to vector<1x128xf32>
    %487 = arith.subf %486, %485 : vector<1x128xf32>
    %488 = vector.broadcast %6 : f32 to vector<1x128xf32>
    %489 = arith.addf %487, %488 : vector<1x128xf32>
    %cst_122 = arith.constant 0.000000e+00 : f32
    %490 = vector.broadcast %cst_122 : f32 to vector<1x128xf32>
    %491 = arith.maximumf %489, %490 : vector<1x128xf32>
    %cst_123 = arith.constant 0.000000e+00 : f32
    %492 = vector.broadcast %cst_123 : f32 to vector<1x128xf32>
    %493 = arith.subf %492, %491 : vector<1x128xf32>
    %494 = vector.broadcast %7 : f32 to vector<1x128xf32>
    %495 = arith.addf %493, %494 : vector<1x128xf32>
    %496 = vector.broadcast %8 : f32 to vector<1x128xf32>
    %497 = arith.subf %459, %496 : vector<1x128xf32>
    %498 = vector.broadcast %1 : f32 to vector<1x128xf32>
    %499 = arith.mulf %497, %498 : vector<1x128xf32>
    %cst_124 = arith.constant 0.000000e+00 : f32
    %500 = vector.broadcast %cst_124 : f32 to vector<1x128xf32>
    %501 = arith.maximumf %499, %500 : vector<1x128xf32>
    %cst_125 = arith.constant 0.000000e+00 : f32
    %502 = vector.broadcast %cst_125 : f32 to vector<1x128xf32>
    %503 = arith.subf %502, %501 : vector<1x128xf32>
    %504 = vector.broadcast %9 : f32 to vector<1x128xf32>
    %505 = arith.addf %503, %504 : vector<1x128xf32>
    %cst_126 = arith.constant 0.000000e+00 : f32
    %506 = vector.broadcast %cst_126 : f32 to vector<1x128xf32>
    %507 = arith.maximumf %505, %506 : vector<1x128xf32>
    %cst_127 = arith.constant 0.000000e+00 : f32
    %508 = vector.broadcast %cst_127 : f32 to vector<1x128xf32>
    %509 = arith.subf %508, %507 : vector<1x128xf32>
    %510 = vector.broadcast %10 : f32 to vector<1x128xf32>
    %511 = arith.addf %509, %510 : vector<1x128xf32>
    %512 = vector.broadcast %11 : f32 to vector<1x128xf32>
    %513 = arith.subf %459, %512 : vector<1x128xf32>
    %514 = vector.broadcast %1 : f32 to vector<1x128xf32>
    %515 = arith.mulf %513, %514 : vector<1x128xf32>
    %cst_128 = arith.constant 0.000000e+00 : f32
    %516 = vector.broadcast %cst_128 : f32 to vector<1x128xf32>
    %517 = arith.maximumf %515, %516 : vector<1x128xf32>
    %cst_129 = arith.constant 0.000000e+00 : f32
    %518 = vector.broadcast %cst_129 : f32 to vector<1x128xf32>
    %519 = arith.subf %518, %517 : vector<1x128xf32>
    %520 = vector.broadcast %12 : f32 to vector<1x128xf32>
    %521 = arith.addf %519, %520 : vector<1x128xf32>
    %cst_130 = arith.constant 0.000000e+00 : f32
    %522 = vector.broadcast %cst_130 : f32 to vector<1x128xf32>
    %523 = arith.maximumf %521, %522 : vector<1x128xf32>
    %cst_131 = arith.constant 0.000000e+00 : f32
    %524 = vector.broadcast %cst_131 : f32 to vector<1x128xf32>
    %525 = arith.subf %524, %523 : vector<1x128xf32>
    %526 = vector.broadcast %13 : f32 to vector<1x128xf32>
    %527 = arith.addf %525, %526 : vector<1x128xf32>
    %528 = vector.broadcast %14 : f32 to vector<1x128xf32>
    %529 = arith.mulf %528, %446 : vector<1x128xf32>
    %530 = vector.broadcast %16 : f32 to vector<1x128xf32>
    %531 = arith.mulf %530, %459 : vector<1x128xf32>
    %532 = arith.addf %529, %531 : vector<1x128xf32>
    %533 = arith.subf %532, %479 : vector<1x128xf32>
    %cst_132 = arith.constant 0.000000e+00 : f32
    %534 = vector.broadcast %cst_132 : f32 to vector<1x128xf32>
    %535 = arith.maximumf %533, %534 : vector<1x128xf32>
    %536 = vector.broadcast %18 : f32 to vector<1x128xf32>
    %537 = arith.mulf %536, %535 : vector<1x128xf32>
    %538 = arith.addf %537, %495 : vector<1x128xf32>
    %539 = arith.subf %538, %479 : vector<1x128xf32>
    %cst_133 = arith.constant 0.000000e+00 : f32
    %540 = vector.broadcast %cst_133 : f32 to vector<1x128xf32>
    %541 = arith.maximumf %539, %540 : vector<1x128xf32>
    %542 = vector.broadcast %20 : f32 to vector<1x128xf32>
    %543 = arith.mulf %542, %541 : vector<1x128xf32>
    %544 = arith.addf %543, %495 : vector<1x128xf32>
    %545 = vector.broadcast %15 : f32 to vector<1x128xf32>
    %546 = arith.mulf %545, %449 : vector<1x128xf32>
    %547 = vector.broadcast %17 : f32 to vector<1x128xf32>
    %548 = arith.mulf %547, %463 : vector<1x128xf32>
    %549 = arith.addf %546, %548 : vector<1x128xf32>
    %550 = arith.subf %549, %511 : vector<1x128xf32>
    %cst_134 = arith.constant 0.000000e+00 : f32
    %551 = vector.broadcast %cst_134 : f32 to vector<1x128xf32>
    %552 = arith.maximumf %550, %551 : vector<1x128xf32>
    %553 = vector.broadcast %19 : f32 to vector<1x128xf32>
    %554 = arith.mulf %553, %552 : vector<1x128xf32>
    %555 = arith.addf %554, %527 : vector<1x128xf32>
    %556 = arith.subf %555, %511 : vector<1x128xf32>
    %cst_135 = arith.constant 0.000000e+00 : f32
    %557 = vector.broadcast %cst_135 : f32 to vector<1x128xf32>
    %558 = arith.maximumf %556, %557 : vector<1x128xf32>
    %559 = vector.broadcast %21 : f32 to vector<1x128xf32>
    %560 = arith.mulf %559, %558 : vector<1x128xf32>
    %561 = arith.addf %560, %527 : vector<1x128xf32>
    %c0_i32_136 = arith.constant 0 : i32
    %562 = arith.cmpi eq, %arg1, %c0_i32_136 : i32
    %c0_i32_137 = arith.constant 0 : i32
    %563 = arith.cmpi eq, %c3_i32, %c0_i32_137 : i32
    %564 = arith.andi %562, %563 : i1
    %565 = arith.select %564, %446, %544 : vector<1x128xf32>
    %566 = arith.select %564, %449, %561 : vector<1x128xf32>
    %c0_138 = arith.constant 0 : index
    %567 = arith.index_cast %c3_i32 : i32 to index
    %c0_139 = arith.constant 0 : index
    %568 = vector.load %arg5[%c0_138, %567, %c0_139] : memref<2x8x128xf32, #tpu.memory_space<vmem>>, vector<1x1x128xf32>
    %569 = vector.shape_cast %568 : vector<1x1x128xf32> to vector<1x128xf32>
    %570 = vector.shape_cast %565 : vector<1x128xf32> to vector<1x1x128xf32>
    tpu.vector_store %arg5[%c0_138, %567, %c0_139], %570 {strides = array<i32>} : memref<2x8x128xf32, #tpu.memory_space<vmem>>, vector<1x1x128xf32>,
    %c1_140 = arith.constant 1 : index
    %571 = arith.index_cast %c3_i32 : i32 to index
    %c0_141 = arith.constant 0 : index
    %572 = vector.load %arg5[%c1_140, %571, %c0_141] : memref<2x8x128xf32, #tpu.memory_space<vmem>>, vector<1x1x128xf32>
    %573 = vector.shape_cast %572 : vector<1x1x128xf32> to vector<1x128xf32>
    %574 = vector.shape_cast %566 : vector<1x128xf32> to vector<1x1x128xf32>
    tpu.vector_store %arg5[%c1_140, %571, %c0_141], %574 {strides = array<i32>} : memref<2x8x128xf32, #tpu.memory_space<vmem>>, vector<1x1x128xf32>,
    %c4_i32 = arith.constant 4 : i32
    %c0_142 = arith.constant 0 : index
    %575 = arith.index_cast %c4_i32 : i32 to index
    %c0_143 = arith.constant 0 : index
    %576 = vector.load %arg4[%c0_142, %575, %c0_143] : memref<2x8x128xf32, #tpu.memory_space<vmem>>, vector<1x1x128xf32>
    %577 = vector.shape_cast %576 : vector<1x1x128xf32> to vector<1x128xf32>
    %c1_144 = arith.constant 1 : index
    %578 = arith.index_cast %c4_i32 : i32 to index
    %c0_145 = arith.constant 0 : index
    %579 = vector.load %arg4[%c1_144, %578, %c0_145] : memref<2x8x128xf32, #tpu.memory_space<vmem>>, vector<1x1x128xf32>
    %580 = vector.shape_cast %579 : vector<1x1x128xf32> to vector<1x128xf32>
    %c0_146 = arith.constant 0 : index
    %581 = arith.index_cast %c4_i32 : i32 to index
    %c0_147 = arith.constant 0 : index
    %582 = vector.load %arg3[%c0_146, %581, %c0_147] : memref<2x8x128xf32, #tpu.memory_space<vmem>>, vector<1x1x128xf32>
    %583 = vector.shape_cast %582 : vector<1x1x128xf32> to vector<1x128xf32>
    %c1_148 = arith.constant 1 : index
    %584 = arith.index_cast %c4_i32 : i32 to index
    %c0_149 = arith.constant 0 : index
    %585 = vector.load %arg3[%c1_148, %584, %c0_149] : memref<2x8x128xf32, #tpu.memory_space<vmem>>, vector<1x1x128xf32>
    %586 = vector.shape_cast %585 : vector<1x1x128xf32> to vector<1x128xf32>
    %587 = arith.mulf %565, %577 : vector<1x128xf32>
    %588 = arith.mulf %566, %580 : vector<1x128xf32>
    %589 = arith.addf %587, %588 : vector<1x128xf32>
    %590 = vector.broadcast %cst : f32 to vector<1x128xf32>
    %591 = arith.addf %590, %589 : vector<1x128xf32>
    %592 = tpu.reciprocal %591 : vector<1x128xf32> -> vector<1x128xf32>
    %593 = vector.broadcast %cst : f32 to vector<1x128xf32>
    %594 = arith.addf %593, %577 : vector<1x128xf32>
    %595 = arith.mulf %565, %594 : vector<1x128xf32>
    %596 = arith.mulf %595, %592 : vector<1x128xf32>
    %597 = vector.broadcast %cst : f32 to vector<1x128xf32>
    %598 = arith.addf %597, %580 : vector<1x128xf32>
    %599 = arith.mulf %566, %598 : vector<1x128xf32>
    %600 = arith.mulf %599, %592 : vector<1x128xf32>
    %601 = vector.broadcast %2 : f32 to vector<1x128xf32>
    %602 = arith.subf %600, %601 : vector<1x128xf32>
    %603 = vector.broadcast %0 : f32 to vector<1x128xf32>
    %604 = arith.mulf %602, %603 : vector<1x128xf32>
    %cst_150 = arith.constant 0.000000e+00 : f32
    %605 = vector.broadcast %cst_150 : f32 to vector<1x128xf32>
    %606 = arith.maximumf %604, %605 : vector<1x128xf32>
    %cst_151 = arith.constant 0.000000e+00 : f32
    %607 = vector.broadcast %cst_151 : f32 to vector<1x128xf32>
    %608 = arith.subf %607, %606 : vector<1x128xf32>
    %609 = vector.broadcast %3 : f32 to vector<1x128xf32>
    %610 = arith.addf %608, %609 : vector<1x128xf32>
    %cst_152 = arith.constant 0.000000e+00 : f32
    %611 = vector.broadcast %cst_152 : f32 to vector<1x128xf32>
    %612 = arith.maximumf %610, %611 : vector<1x128xf32>
    %cst_153 = arith.constant 0.000000e+00 : f32
    %613 = vector.broadcast %cst_153 : f32 to vector<1x128xf32>
    %614 = arith.subf %613, %612 : vector<1x128xf32>
    %615 = vector.broadcast %4 : f32 to vector<1x128xf32>
    %616 = arith.addf %614, %615 : vector<1x128xf32>
    %617 = vector.broadcast %5 : f32 to vector<1x128xf32>
    %618 = arith.subf %600, %617 : vector<1x128xf32>
    %619 = vector.broadcast %0 : f32 to vector<1x128xf32>
    %620 = arith.mulf %618, %619 : vector<1x128xf32>
    %cst_154 = arith.constant 0.000000e+00 : f32
    %621 = vector.broadcast %cst_154 : f32 to vector<1x128xf32>
    %622 = arith.maximumf %620, %621 : vector<1x128xf32>
    %cst_155 = arith.constant 0.000000e+00 : f32
    %623 = vector.broadcast %cst_155 : f32 to vector<1x128xf32>
    %624 = arith.subf %623, %622 : vector<1x128xf32>
    %625 = vector.broadcast %6 : f32 to vector<1x128xf32>
    %626 = arith.addf %624, %625 : vector<1x128xf32>
    %cst_156 = arith.constant 0.000000e+00 : f32
    %627 = vector.broadcast %cst_156 : f32 to vector<1x128xf32>
    %628 = arith.maximumf %626, %627 : vector<1x128xf32>
    %cst_157 = arith.constant 0.000000e+00 : f32
    %629 = vector.broadcast %cst_157 : f32 to vector<1x128xf32>
    %630 = arith.subf %629, %628 : vector<1x128xf32>
    %631 = vector.broadcast %7 : f32 to vector<1x128xf32>
    %632 = arith.addf %630, %631 : vector<1x128xf32>
    %633 = vector.broadcast %8 : f32 to vector<1x128xf32>
    %634 = arith.subf %596, %633 : vector<1x128xf32>
    %635 = vector.broadcast %1 : f32 to vector<1x128xf32>
    %636 = arith.mulf %634, %635 : vector<1x128xf32>
    %cst_158 = arith.constant 0.000000e+00 : f32
    %637 = vector.broadcast %cst_158 : f32 to vector<1x128xf32>
    %638 = arith.maximumf %636, %637 : vector<1x128xf32>
    %cst_159 = arith.constant 0.000000e+00 : f32
    %639 = vector.broadcast %cst_159 : f32 to vector<1x128xf32>
    %640 = arith.subf %639, %638 : vector<1x128xf32>
    %641 = vector.broadcast %9 : f32 to vector<1x128xf32>
    %642 = arith.addf %640, %641 : vector<1x128xf32>
    %cst_160 = arith.constant 0.000000e+00 : f32
    %643 = vector.broadcast %cst_160 : f32 to vector<1x128xf32>
    %644 = arith.maximumf %642, %643 : vector<1x128xf32>
    %cst_161 = arith.constant 0.000000e+00 : f32
    %645 = vector.broadcast %cst_161 : f32 to vector<1x128xf32>
    %646 = arith.subf %645, %644 : vector<1x128xf32>
    %647 = vector.broadcast %10 : f32 to vector<1x128xf32>
    %648 = arith.addf %646, %647 : vector<1x128xf32>
    %649 = vector.broadcast %11 : f32 to vector<1x128xf32>
    %650 = arith.subf %596, %649 : vector<1x128xf32>
    %651 = vector.broadcast %1 : f32 to vector<1x128xf32>
    %652 = arith.mulf %650, %651 : vector<1x128xf32>
    %cst_162 = arith.constant 0.000000e+00 : f32
    %653 = vector.broadcast %cst_162 : f32 to vector<1x128xf32>
    %654 = arith.maximumf %652, %653 : vector<1x128xf32>
    %cst_163 = arith.constant 0.000000e+00 : f32
    %655 = vector.broadcast %cst_163 : f32 to vector<1x128xf32>
    %656 = arith.subf %655, %654 : vector<1x128xf32>
    %657 = vector.broadcast %12 : f32 to vector<1x128xf32>
    %658 = arith.addf %656, %657 : vector<1x128xf32>
    %cst_164 = arith.constant 0.000000e+00 : f32
    %659 = vector.broadcast %cst_164 : f32 to vector<1x128xf32>
    %660 = arith.maximumf %658, %659 : vector<1x128xf32>
    %cst_165 = arith.constant 0.000000e+00 : f32
    %661 = vector.broadcast %cst_165 : f32 to vector<1x128xf32>
    %662 = arith.subf %661, %660 : vector<1x128xf32>
    %663 = vector.broadcast %13 : f32 to vector<1x128xf32>
    %664 = arith.addf %662, %663 : vector<1x128xf32>
    %665 = vector.broadcast %14 : f32 to vector<1x128xf32>
    %666 = arith.mulf %665, %583 : vector<1x128xf32>
    %667 = vector.broadcast %16 : f32 to vector<1x128xf32>
    %668 = arith.mulf %667, %596 : vector<1x128xf32>
    %669 = arith.addf %666, %668 : vector<1x128xf32>
    %670 = arith.subf %669, %616 : vector<1x128xf32>
    %cst_166 = arith.constant 0.000000e+00 : f32
    %671 = vector.broadcast %cst_166 : f32 to vector<1x128xf32>
    %672 = arith.maximumf %670, %671 : vector<1x128xf32>
    %673 = vector.broadcast %18 : f32 to vector<1x128xf32>
    %674 = arith.mulf %673, %672 : vector<1x128xf32>
    %675 = arith.addf %674, %632 : vector<1x128xf32>
    %676 = arith.subf %675, %616 : vector<1x128xf32>
    %cst_167 = arith.constant 0.000000e+00 : f32
    %677 = vector.broadcast %cst_167 : f32 to vector<1x128xf32>
    %678 = arith.maximumf %676, %677 : vector<1x128xf32>
    %679 = vector.broadcast %20 : f32 to vector<1x128xf32>
    %680 = arith.mulf %679, %678 : vector<1x128xf32>
    %681 = arith.addf %680, %632 : vector<1x128xf32>
    %682 = vector.broadcast %15 : f32 to vector<1x128xf32>
    %683 = arith.mulf %682, %586 : vector<1x128xf32>
    %684 = vector.broadcast %17 : f32 to vector<1x128xf32>
    %685 = arith.mulf %684, %600 : vector<1x128xf32>
    %686 = arith.addf %683, %685 : vector<1x128xf32>
    %687 = arith.subf %686, %648 : vector<1x128xf32>
    %cst_168 = arith.constant 0.000000e+00 : f32
    %688 = vector.broadcast %cst_168 : f32 to vector<1x128xf32>
    %689 = arith.maximumf %687, %688 : vector<1x128xf32>
    %690 = vector.broadcast %19 : f32 to vector<1x128xf32>
    %691 = arith.mulf %690, %689 : vector<1x128xf32>
    %692 = arith.addf %691, %664 : vector<1x128xf32>
    %693 = arith.subf %692, %648 : vector<1x128xf32>
    %cst_169 = arith.constant 0.000000e+00 : f32
    %694 = vector.broadcast %cst_169 : f32 to vector<1x128xf32>
    %695 = arith.maximumf %693, %694 : vector<1x128xf32>
    %696 = vector.broadcast %21 : f32 to vector<1x128xf32>
    %697 = arith.mulf %696, %695 : vector<1x128xf32>
    %698 = arith.addf %697, %664 : vector<1x128xf32>
    %c0_i32_170 = arith.constant 0 : i32
    %699 = arith.cmpi eq, %arg1, %c0_i32_170 : i32
    %c0_i32_171 = arith.constant 0 : i32
    %700 = arith.cmpi eq, %c4_i32, %c0_i32_171 : i32
    %701 = arith.andi %699, %700 : i1
    %702 = arith.select %701, %583, %681 : vector<1x128xf32>
    %703 = arith.select %701, %586, %698 : vector<1x128xf32>
    %c0_172 = arith.constant 0 : index
    %704 = arith.index_cast %c4_i32 : i32 to index
    %c0_173 = arith.constant 0 : index
    %705 = vector.load %arg5[%c0_172, %704, %c0_173] : memref<2x8x128xf32, #tpu.memory_space<vmem>>, vector<1x1x128xf32>
    %706 = vector.shape_cast %705 : vector<1x1x128xf32> to vector<1x128xf32>
    %707 = vector.shape_cast %702 : vector<1x128xf32> to vector<1x1x128xf32>
    tpu.vector_store %arg5[%c0_172, %704, %c0_173], %707 {strides = array<i32>} : memref<2x8x128xf32, #tpu.memory_space<vmem>>, vector<1x1x128xf32>,
    %c1_174 = arith.constant 1 : index
    %708 = arith.index_cast %c4_i32 : i32 to index
    %c0_175 = arith.constant 0 : index
    %709 = vector.load %arg5[%c1_174, %708, %c0_175] : memref<2x8x128xf32, #tpu.memory_space<vmem>>, vector<1x1x128xf32>
    %710 = vector.shape_cast %709 : vector<1x1x128xf32> to vector<1x128xf32>
    %711 = vector.shape_cast %703 : vector<1x128xf32> to vector<1x1x128xf32>
    tpu.vector_store %arg5[%c1_174, %708, %c0_175], %711 {strides = array<i32>} : memref<2x8x128xf32, #tpu.memory_space<vmem>>, vector<1x1x128xf32>,
    %c5_i32 = arith.constant 5 : i32
    %c0_176 = arith.constant 0 : index
    %712 = arith.index_cast %c5_i32 : i32 to index
    %c0_177 = arith.constant 0 : index
    %713 = vector.load %arg4[%c0_176, %712, %c0_177] : memref<2x8x128xf32, #tpu.memory_space<vmem>>, vector<1x1x128xf32>
    %714 = vector.shape_cast %713 : vector<1x1x128xf32> to vector<1x128xf32>
    %c1_178 = arith.constant 1 : index
    %715 = arith.index_cast %c5_i32 : i32 to index
    %c0_179 = arith.constant 0 : index
    %716 = vector.load %arg4[%c1_178, %715, %c0_179] : memref<2x8x128xf32, #tpu.memory_space<vmem>>, vector<1x1x128xf32>
    %717 = vector.shape_cast %716 : vector<1x1x128xf32> to vector<1x128xf32>
    %c0_180 = arith.constant 0 : index
    %718 = arith.index_cast %c5_i32 : i32 to index
    %c0_181 = arith.constant 0 : index
    %719 = vector.load %arg3[%c0_180, %718, %c0_181] : memref<2x8x128xf32, #tpu.memory_space<vmem>>, vector<1x1x128xf32>
    %720 = vector.shape_cast %719 : vector<1x1x128xf32> to vector<1x128xf32>
    %c1_182 = arith.constant 1 : index
    %721 = arith.index_cast %c5_i32 : i32 to index
    %c0_183 = arith.constant 0 : index
    %722 = vector.load %arg3[%c1_182, %721, %c0_183] : memref<2x8x128xf32, #tpu.memory_space<vmem>>, vector<1x1x128xf32>
    %723 = vector.shape_cast %722 : vector<1x1x128xf32> to vector<1x128xf32>
    %724 = arith.mulf %702, %714 : vector<1x128xf32>
    %725 = arith.mulf %703, %717 : vector<1x128xf32>
    %726 = arith.addf %724, %725 : vector<1x128xf32>
    %727 = vector.broadcast %cst : f32 to vector<1x128xf32>
    %728 = arith.addf %727, %726 : vector<1x128xf32>
    %729 = tpu.reciprocal %728 : vector<1x128xf32> -> vector<1x128xf32>
    %730 = vector.broadcast %cst : f32 to vector<1x128xf32>
    %731 = arith.addf %730, %714 : vector<1x128xf32>
    %732 = arith.mulf %702, %731 : vector<1x128xf32>
    %733 = arith.mulf %732, %729 : vector<1x128xf32>
    %734 = vector.broadcast %cst : f32 to vector<1x128xf32>
    %735 = arith.addf %734, %717 : vector<1x128xf32>
    %736 = arith.mulf %703, %735 : vector<1x128xf32>
    %737 = arith.mulf %736, %729 : vector<1x128xf32>
    %738 = vector.broadcast %2 : f32 to vector<1x128xf32>
    %739 = arith.subf %737, %738 : vector<1x128xf32>
    %740 = vector.broadcast %0 : f32 to vector<1x128xf32>
    %741 = arith.mulf %739, %740 : vector<1x128xf32>
    %cst_184 = arith.constant 0.000000e+00 : f32
    %742 = vector.broadcast %cst_184 : f32 to vector<1x128xf32>
    %743 = arith.maximumf %741, %742 : vector<1x128xf32>
    %cst_185 = arith.constant 0.000000e+00 : f32
    %744 = vector.broadcast %cst_185 : f32 to vector<1x128xf32>
    %745 = arith.subf %744, %743 : vector<1x128xf32>
    %746 = vector.broadcast %3 : f32 to vector<1x128xf32>
    %747 = arith.addf %745, %746 : vector<1x128xf32>
    %cst_186 = arith.constant 0.000000e+00 : f32
    %748 = vector.broadcast %cst_186 : f32 to vector<1x128xf32>
    %749 = arith.maximumf %747, %748 : vector<1x128xf32>
    %cst_187 = arith.constant 0.000000e+00 : f32
    %750 = vector.broadcast %cst_187 : f32 to vector<1x128xf32>
    %751 = arith.subf %750, %749 : vector<1x128xf32>
    %752 = vector.broadcast %4 : f32 to vector<1x128xf32>
    %753 = arith.addf %751, %752 : vector<1x128xf32>
    %754 = vector.broadcast %5 : f32 to vector<1x128xf32>
    %755 = arith.subf %737, %754 : vector<1x128xf32>
    %756 = vector.broadcast %0 : f32 to vector<1x128xf32>
    %757 = arith.mulf %755, %756 : vector<1x128xf32>
    %cst_188 = arith.constant 0.000000e+00 : f32
    %758 = vector.broadcast %cst_188 : f32 to vector<1x128xf32>
    %759 = arith.maximumf %757, %758 : vector<1x128xf32>
    %cst_189 = arith.constant 0.000000e+00 : f32
    %760 = vector.broadcast %cst_189 : f32 to vector<1x128xf32>
    %761 = arith.subf %760, %759 : vector<1x128xf32>
    %762 = vector.broadcast %6 : f32 to vector<1x128xf32>
    %763 = arith.addf %761, %762 : vector<1x128xf32>
    %cst_190 = arith.constant 0.000000e+00 : f32
    %764 = vector.broadcast %cst_190 : f32 to vector<1x128xf32>
    %765 = arith.maximumf %763, %764 : vector<1x128xf32>
    %cst_191 = arith.constant 0.000000e+00 : f32
    %766 = vector.broadcast %cst_191 : f32 to vector<1x128xf32>
    %767 = arith.subf %766, %765 : vector<1x128xf32>
    %768 = vector.broadcast %7 : f32 to vector<1x128xf32>
    %769 = arith.addf %767, %768 : vector<1x128xf32>
    %770 = vector.broadcast %8 : f32 to vector<1x128xf32>
    %771 = arith.subf %733, %770 : vector<1x128xf32>
    %772 = vector.broadcast %1 : f32 to vector<1x128xf32>
    %773 = arith.mulf %771, %772 : vector<1x128xf32>
    %cst_192 = arith.constant 0.000000e+00 : f32
    %774 = vector.broadcast %cst_192 : f32 to vector<1x128xf32>
    %775 = arith.maximumf %773, %774 : vector<1x128xf32>
    %cst_193 = arith.constant 0.000000e+00 : f32
    %776 = vector.broadcast %cst_193 : f32 to vector<1x128xf32>
    %777 = arith.subf %776, %775 : vector<1x128xf32>
    %778 = vector.broadcast %9 : f32 to vector<1x128xf32>
    %779 = arith.addf %777, %778 : vector<1x128xf32>
    %cst_194 = arith.constant 0.000000e+00 : f32
    %780 = vector.broadcast %cst_194 : f32 to vector<1x128xf32>
    %781 = arith.maximumf %779, %780 : vector<1x128xf32>
    %cst_195 = arith.constant 0.000000e+00 : f32
    %782 = vector.broadcast %cst_195 : f32 to vector<1x128xf32>
    %783 = arith.subf %782, %781 : vector<1x128xf32>
    %784 = vector.broadcast %10 : f32 to vector<1x128xf32>
    %785 = arith.addf %783, %784 : vector<1x128xf32>
    %786 = vector.broadcast %11 : f32 to vector<1x128xf32>
    %787 = arith.subf %733, %786 : vector<1x128xf32>
    %788 = vector.broadcast %1 : f32 to vector<1x128xf32>
    %789 = arith.mulf %787, %788 : vector<1x128xf32>
    %cst_196 = arith.constant 0.000000e+00 : f32
    %790 = vector.broadcast %cst_196 : f32 to vector<1x128xf32>
    %791 = arith.maximumf %789, %790 : vector<1x128xf32>
    %cst_197 = arith.constant 0.000000e+00 : f32
    %792 = vector.broadcast %cst_197 : f32 to vector<1x128xf32>
    %793 = arith.subf %792, %791 : vector<1x128xf32>
    %794 = vector.broadcast %12 : f32 to vector<1x128xf32>
    %795 = arith.addf %793, %794 : vector<1x128xf32>
    %cst_198 = arith.constant 0.000000e+00 : f32
    %796 = vector.broadcast %cst_198 : f32 to vector<1x128xf32>
    %797 = arith.maximumf %795, %796 : vector<1x128xf32>
    %cst_199 = arith.constant 0.000000e+00 : f32
    %798 = vector.broadcast %cst_199 : f32 to vector<1x128xf32>
    %799 = arith.subf %798, %797 : vector<1x128xf32>
    %800 = vector.broadcast %13 : f32 to vector<1x128xf32>
    %801 = arith.addf %799, %800 : vector<1x128xf32>
    %802 = vector.broadcast %14 : f32 to vector<1x128xf32>
    %803 = arith.mulf %802, %720 : vector<1x128xf32>
    %804 = vector.broadcast %16 : f32 to vector<1x128xf32>
    %805 = arith.mulf %804, %733 : vector<1x128xf32>
    %806 = arith.addf %803, %805 : vector<1x128xf32>
    %807 = arith.subf %806, %753 : vector<1x128xf32>
    %cst_200 = arith.constant 0.000000e+00 : f32
    %808 = vector.broadcast %cst_200 : f32 to vector<1x128xf32>
    %809 = arith.maximumf %807, %808 : vector<1x128xf32>
    %810 = vector.broadcast %18 : f32 to vector<1x128xf32>
    %811 = arith.mulf %810, %809 : vector<1x128xf32>
    %812 = arith.addf %811, %769 : vector<1x128xf32>
    %813 = arith.subf %812, %753 : vector<1x128xf32>
    %cst_201 = arith.constant 0.000000e+00 : f32
    %814 = vector.broadcast %cst_201 : f32 to vector<1x128xf32>
    %815 = arith.maximumf %813, %814 : vector<1x128xf32>
    %816 = vector.broadcast %20 : f32 to vector<1x128xf32>
    %817 = arith.mulf %816, %815 : vector<1x128xf32>
    %818 = arith.addf %817, %769 : vector<1x128xf32>
    %819 = vector.broadcast %15 : f32 to vector<1x128xf32>
    %820 = arith.mulf %819, %723 : vector<1x128xf32>
    %821 = vector.broadcast %17 : f32 to vector<1x128xf32>
    %822 = arith.mulf %821, %737 : vector<1x128xf32>
    %823 = arith.addf %820, %822 : vector<1x128xf32>
    %824 = arith.subf %823, %785 : vector<1x128xf32>
    %cst_202 = arith.constant 0.000000e+00 : f32
    %825 = vector.broadcast %cst_202 : f32 to vector<1x128xf32>
    %826 = arith.maximumf %824, %825 : vector<1x128xf32>
    %827 = vector.broadcast %19 : f32 to vector<1x128xf32>
    %828 = arith.mulf %827, %826 : vector<1x128xf32>
    %829 = arith.addf %828, %801 : vector<1x128xf32>
    %830 = arith.subf %829, %785 : vector<1x128xf32>
    %cst_203 = arith.constant 0.000000e+00 : f32
    %831 = vector.broadcast %cst_203 : f32 to vector<1x128xf32>
    %832 = arith.maximumf %830, %831 : vector<1x128xf32>
    %833 = vector.broadcast %21 : f32 to vector<1x128xf32>
    %834 = arith.mulf %833, %832 : vector<1x128xf32>
    %835 = arith.addf %834, %801 : vector<1x128xf32>
    %c0_i32_204 = arith.constant 0 : i32
    %836 = arith.cmpi eq, %arg1, %c0_i32_204 : i32
    %c0_i32_205 = arith.constant 0 : i32
    %837 = arith.cmpi eq, %c5_i32, %c0_i32_205 : i32
    %838 = arith.andi %836, %837 : i1
    %839 = arith.select %838, %720, %818 : vector<1x128xf32>
    %840 = arith.select %838, %723, %835 : vector<1x128xf32>
    %c0_206 = arith.constant 0 : index
    %841 = arith.index_cast %c5_i32 : i32 to index
    %c0_207 = arith.constant 0 : index
    %842 = vector.load %arg5[%c0_206, %841, %c0_207] : memref<2x8x128xf32, #tpu.memory_space<vmem>>, vector<1x1x128xf32>
    %843 = vector.shape_cast %842 : vector<1x1x128xf32> to vector<1x128xf32>
    %844 = vector.shape_cast %839 : vector<1x128xf32> to vector<1x1x128xf32>
    tpu.vector_store %arg5[%c0_206, %841, %c0_207], %844 {strides = array<i32>} : memref<2x8x128xf32, #tpu.memory_space<vmem>>, vector<1x1x128xf32>,
    %c1_208 = arith.constant 1 : index
    %845 = arith.index_cast %c5_i32 : i32 to index
    %c0_209 = arith.constant 0 : index
    %846 = vector.load %arg5[%c1_208, %845, %c0_209] : memref<2x8x128xf32, #tpu.memory_space<vmem>>, vector<1x1x128xf32>
    %847 = vector.shape_cast %846 : vector<1x1x128xf32> to vector<1x128xf32>
    %848 = vector.shape_cast %840 : vector<1x128xf32> to vector<1x1x128xf32>
    tpu.vector_store %arg5[%c1_208, %845, %c0_209], %848 {strides = array<i32>} : memref<2x8x128xf32, #tpu.memory_space<vmem>>, vector<1x1x128xf32>,
    %c6_i32 = arith.constant 6 : i32
    %c0_210 = arith.constant 0 : index
    %849 = arith.index_cast %c6_i32 : i32 to index
    %c0_211 = arith.constant 0 : index
    %850 = vector.load %arg4[%c0_210, %849, %c0_211] : memref<2x8x128xf32, #tpu.memory_space<vmem>>, vector<1x1x128xf32>
    %851 = vector.shape_cast %850 : vector<1x1x128xf32> to vector<1x128xf32>
    %c1_212 = arith.constant 1 : index
    %852 = arith.index_cast %c6_i32 : i32 to index
    %c0_213 = arith.constant 0 : index
    %853 = vector.load %arg4[%c1_212, %852, %c0_213] : memref<2x8x128xf32, #tpu.memory_space<vmem>>, vector<1x1x128xf32>
    %854 = vector.shape_cast %853 : vector<1x1x128xf32> to vector<1x128xf32>
    %c0_214 = arith.constant 0 : index
    %855 = arith.index_cast %c6_i32 : i32 to index
    %c0_215 = arith.constant 0 : index
    %856 = vector.load %arg3[%c0_214, %855, %c0_215] : memref<2x8x128xf32, #tpu.memory_space<vmem>>, vector<1x1x128xf32>
    %857 = vector.shape_cast %856 : vector<1x1x128xf32> to vector<1x128xf32>
    %c1_216 = arith.constant 1 : index
    %858 = arith.index_cast %c6_i32 : i32 to index
    %c0_217 = arith.constant 0 : index
    %859 = vector.load %arg3[%c1_216, %858, %c0_217] : memref<2x8x128xf32, #tpu.memory_space<vmem>>, vector<1x1x128xf32>
    %860 = vector.shape_cast %859 : vector<1x1x128xf32> to vector<1x128xf32>
    %861 = arith.mulf %839, %851 : vector<1x128xf32>
    %862 = arith.mulf %840, %854 : vector<1x128xf32>
    %863 = arith.addf %861, %862 : vector<1x128xf32>
    %864 = vector.broadcast %cst : f32 to vector<1x128xf32>
    %865 = arith.addf %864, %863 : vector<1x128xf32>
    %866 = tpu.reciprocal %865 : vector<1x128xf32> -> vector<1x128xf32>
    %867 = vector.broadcast %cst : f32 to vector<1x128xf32>
    %868 = arith.addf %867, %851 : vector<1x128xf32>
    %869 = arith.mulf %839, %868 : vector<1x128xf32>
    %870 = arith.mulf %869, %866 : vector<1x128xf32>
    %871 = vector.broadcast %cst : f32 to vector<1x128xf32>
    %872 = arith.addf %871, %854 : vector<1x128xf32>
    %873 = arith.mulf %840, %872 : vector<1x128xf32>
    %874 = arith.mulf %873, %866 : vector<1x128xf32>
    %875 = vector.broadcast %2 : f32 to vector<1x128xf32>
    %876 = arith.subf %874, %875 : vector<1x128xf32>
    %877 = vector.broadcast %0 : f32 to vector<1x128xf32>
    %878 = arith.mulf %876, %877 : vector<1x128xf32>
    %cst_218 = arith.constant 0.000000e+00 : f32
    %879 = vector.broadcast %cst_218 : f32 to vector<1x128xf32>
    %880 = arith.maximumf %878, %879 : vector<1x128xf32>
    %cst_219 = arith.constant 0.000000e+00 : f32
    %881 = vector.broadcast %cst_219 : f32 to vector<1x128xf32>
    %882 = arith.subf %881, %880 : vector<1x128xf32>
    %883 = vector.broadcast %3 : f32 to vector<1x128xf32>
    %884 = arith.addf %882, %883 : vector<1x128xf32>
    %cst_220 = arith.constant 0.000000e+00 : f32
    %885 = vector.broadcast %cst_220 : f32 to vector<1x128xf32>
    %886 = arith.maximumf %884, %885 : vector<1x128xf32>
    %cst_221 = arith.constant 0.000000e+00 : f32
    %887 = vector.broadcast %cst_221 : f32 to vector<1x128xf32>
    %888 = arith.subf %887, %886 : vector<1x128xf32>
    %889 = vector.broadcast %4 : f32 to vector<1x128xf32>
    %890 = arith.addf %888, %889 : vector<1x128xf32>
    %891 = vector.broadcast %5 : f32 to vector<1x128xf32>
    %892 = arith.subf %874, %891 : vector<1x128xf32>
    %893 = vector.broadcast %0 : f32 to vector<1x128xf32>
    %894 = arith.mulf %892, %893 : vector<1x128xf32>
    %cst_222 = arith.constant 0.000000e+00 : f32
    %895 = vector.broadcast %cst_222 : f32 to vector<1x128xf32>
    %896 = arith.maximumf %894, %895 : vector<1x128xf32>
    %cst_223 = arith.constant 0.000000e+00 : f32
    %897 = vector.broadcast %cst_223 : f32 to vector<1x128xf32>
    %898 = arith.subf %897, %896 : vector<1x128xf32>
    %899 = vector.broadcast %6 : f32 to vector<1x128xf32>
    %900 = arith.addf %898, %899 : vector<1x128xf32>
    %cst_224 = arith.constant 0.000000e+00 : f32
    %901 = vector.broadcast %cst_224 : f32 to vector<1x128xf32>
    %902 = arith.maximumf %900, %901 : vector<1x128xf32>
    %cst_225 = arith.constant 0.000000e+00 : f32
    %903 = vector.broadcast %cst_225 : f32 to vector<1x128xf32>
    %904 = arith.subf %903, %902 : vector<1x128xf32>
    %905 = vector.broadcast %7 : f32 to vector<1x128xf32>
    %906 = arith.addf %904, %905 : vector<1x128xf32>
    %907 = vector.broadcast %8 : f32 to vector<1x128xf32>
    %908 = arith.subf %870, %907 : vector<1x128xf32>
    %909 = vector.broadcast %1 : f32 to vector<1x128xf32>
    %910 = arith.mulf %908, %909 : vector<1x128xf32>
    %cst_226 = arith.constant 0.000000e+00 : f32
    %911 = vector.broadcast %cst_226 : f32 to vector<1x128xf32>
    %912 = arith.maximumf %910, %911 : vector<1x128xf32>
    %cst_227 = arith.constant 0.000000e+00 : f32
    %913 = vector.broadcast %cst_227 : f32 to vector<1x128xf32>
    %914 = arith.subf %913, %912 : vector<1x128xf32>
    %915 = vector.broadcast %9 : f32 to vector<1x128xf32>
    %916 = arith.addf %914, %915 : vector<1x128xf32>
    %cst_228 = arith.constant 0.000000e+00 : f32
    %917 = vector.broadcast %cst_228 : f32 to vector<1x128xf32>
    %918 = arith.maximumf %916, %917 : vector<1x128xf32>
    %cst_229 = arith.constant 0.000000e+00 : f32
    %919 = vector.broadcast %cst_229 : f32 to vector<1x128xf32>
    %920 = arith.subf %919, %918 : vector<1x128xf32>
    %921 = vector.broadcast %10 : f32 to vector<1x128xf32>
    %922 = arith.addf %920, %921 : vector<1x128xf32>
    %923 = vector.broadcast %11 : f32 to vector<1x128xf32>
    %924 = arith.subf %870, %923 : vector<1x128xf32>
    %925 = vector.broadcast %1 : f32 to vector<1x128xf32>
    %926 = arith.mulf %924, %925 : vector<1x128xf32>
    %cst_230 = arith.constant 0.000000e+00 : f32
    %927 = vector.broadcast %cst_230 : f32 to vector<1x128xf32>
    %928 = arith.maximumf %926, %927 : vector<1x128xf32>
    %cst_231 = arith.constant 0.000000e+00 : f32
    %929 = vector.broadcast %cst_231 : f32 to vector<1x128xf32>
    %930 = arith.subf %929, %928 : vector<1x128xf32>
    %931 = vector.broadcast %12 : f32 to vector<1x128xf32>
    %932 = arith.addf %930, %931 : vector<1x128xf32>
    %cst_232 = arith.constant 0.000000e+00 : f32
    %933 = vector.broadcast %cst_232 : f32 to vector<1x128xf32>
    %934 = arith.maximumf %932, %933 : vector<1x128xf32>
    %cst_233 = arith.constant 0.000000e+00 : f32
    %935 = vector.broadcast %cst_233 : f32 to vector<1x128xf32>
    %936 = arith.subf %935, %934 : vector<1x128xf32>
    %937 = vector.broadcast %13 : f32 to vector<1x128xf32>
    %938 = arith.addf %936, %937 : vector<1x128xf32>
    %939 = vector.broadcast %14 : f32 to vector<1x128xf32>
    %940 = arith.mulf %939, %857 : vector<1x128xf32>
    %941 = vector.broadcast %16 : f32 to vector<1x128xf32>
    %942 = arith.mulf %941, %870 : vector<1x128xf32>
    %943 = arith.addf %940, %942 : vector<1x128xf32>
    %944 = arith.subf %943, %890 : vector<1x128xf32>
    %cst_234 = arith.constant 0.000000e+00 : f32
    %945 = vector.broadcast %cst_234 : f32 to vector<1x128xf32>
    %946 = arith.maximumf %944, %945 : vector<1x128xf32>
    %947 = vector.broadcast %18 : f32 to vector<1x128xf32>
    %948 = arith.mulf %947, %946 : vector<1x128xf32>
    %949 = arith.addf %948, %906 : vector<1x128xf32>
    %950 = arith.subf %949, %890 : vector<1x128xf32>
    %cst_235 = arith.constant 0.000000e+00 : f32
    %951 = vector.broadcast %cst_235 : f32 to vector<1x128xf32>
    %952 = arith.maximumf %950, %951 : vector<1x128xf32>
    %953 = vector.broadcast %20 : f32 to vector<1x128xf32>
    %954 = arith.mulf %953, %952 : vector<1x128xf32>
    %955 = arith.addf %954, %906 : vector<1x128xf32>
    %956 = vector.broadcast %15 : f32 to vector<1x128xf32>
    %957 = arith.mulf %956, %860 : vector<1x128xf32>
    %958 = vector.broadcast %17 : f32 to vector<1x128xf32>
    %959 = arith.mulf %958, %874 : vector<1x128xf32>
    %960 = arith.addf %957, %959 : vector<1x128xf32>
    %961 = arith.subf %960, %922 : vector<1x128xf32>
    %cst_236 = arith.constant 0.000000e+00 : f32
    %962 = vector.broadcast %cst_236 : f32 to vector<1x128xf32>
    %963 = arith.maximumf %961, %962 : vector<1x128xf32>
    %964 = vector.broadcast %19 : f32 to vector<1x128xf32>
    %965 = arith.mulf %964, %963 : vector<1x128xf32>
    %966 = arith.addf %965, %938 : vector<1x128xf32>
    %967 = arith.subf %966, %922 : vector<1x128xf32>
    %cst_237 = arith.constant 0.000000e+00 : f32
    %968 = vector.broadcast %cst_237 : f32 to vector<1x128xf32>
    %969 = arith.maximumf %967, %968 : vector<1x128xf32>
    %970 = vector.broadcast %21 : f32 to vector<1x128xf32>
    %971 = arith.mulf %970, %969 : vector<1x128xf32>
    %972 = arith.addf %971, %938 : vector<1x128xf32>
    %c0_i32_238 = arith.constant 0 : i32
    %973 = arith.cmpi eq, %arg1, %c0_i32_238 : i32
    %c0_i32_239 = arith.constant 0 : i32
    %974 = arith.cmpi eq, %c6_i32, %c0_i32_239 : i32
    %975 = arith.andi %973, %974 : i1
    %976 = arith.select %975, %857, %955 : vector<1x128xf32>
    %977 = arith.select %975, %860, %972 : vector<1x128xf32>
    %c0_240 = arith.constant 0 : index
    %978 = arith.index_cast %c6_i32 : i32 to index
    %c0_241 = arith.constant 0 : index
    %979 = vector.load %arg5[%c0_240, %978, %c0_241] : memref<2x8x128xf32, #tpu.memory_space<vmem>>, vector<1x1x128xf32>
    %980 = vector.shape_cast %979 : vector<1x1x128xf32> to vector<1x128xf32>
    %981 = vector.shape_cast %976 : vector<1x128xf32> to vector<1x1x128xf32>
    tpu.vector_store %arg5[%c0_240, %978, %c0_241], %981 {strides = array<i32>} : memref<2x8x128xf32, #tpu.memory_space<vmem>>, vector<1x1x128xf32>,
    %c1_242 = arith.constant 1 : index
    %982 = arith.index_cast %c6_i32 : i32 to index
    %c0_243 = arith.constant 0 : index
    %983 = vector.load %arg5[%c1_242, %982, %c0_243] : memref<2x8x128xf32, #tpu.memory_space<vmem>>, vector<1x1x128xf32>
    %984 = vector.shape_cast %983 : vector<1x1x128xf32> to vector<1x128xf32>
    %985 = vector.shape_cast %977 : vector<1x128xf32> to vector<1x1x128xf32>
    tpu.vector_store %arg5[%c1_242, %982, %c0_243], %985 {strides = array<i32>} : memref<2x8x128xf32, #tpu.memory_space<vmem>>, vector<1x1x128xf32>,
    %c7_i32 = arith.constant 7 : i32
    %c0_244 = arith.constant 0 : index
    %986 = arith.index_cast %c7_i32 : i32 to index
    %c0_245 = arith.constant 0 : index
    %987 = vector.load %arg4[%c0_244, %986, %c0_245] : memref<2x8x128xf32, #tpu.memory_space<vmem>>, vector<1x1x128xf32>
    %988 = vector.shape_cast %987 : vector<1x1x128xf32> to vector<1x128xf32>
    %c1_246 = arith.constant 1 : index
    %989 = arith.index_cast %c7_i32 : i32 to index
    %c0_247 = arith.constant 0 : index
    %990 = vector.load %arg4[%c1_246, %989, %c0_247] : memref<2x8x128xf32, #tpu.memory_space<vmem>>, vector<1x1x128xf32>
    %991 = vector.shape_cast %990 : vector<1x1x128xf32> to vector<1x128xf32>
    %c0_248 = arith.constant 0 : index
    %992 = arith.index_cast %c7_i32 : i32 to index
    %c0_249 = arith.constant 0 : index
    %993 = vector.load %arg3[%c0_248, %992, %c0_249] : memref<2x8x128xf32, #tpu.memory_space<vmem>>, vector<1x1x128xf32>
    %994 = vector.shape_cast %993 : vector<1x1x128xf32> to vector<1x128xf32>
    %c1_250 = arith.constant 1 : index
    %995 = arith.index_cast %c7_i32 : i32 to index
    %c0_251 = arith.constant 0 : index
    %996 = vector.load %arg3[%c1_250, %995, %c0_251] : memref<2x8x128xf32, #tpu.memory_space<vmem>>, vector<1x1x128xf32>
    %997 = vector.shape_cast %996 : vector<1x1x128xf32> to vector<1x128xf32>
    %998 = arith.mulf %976, %988 : vector<1x128xf32>
    %999 = arith.mulf %977, %991 : vector<1x128xf32>
    %1000 = arith.addf %998, %999 : vector<1x128xf32>
    %1001 = vector.broadcast %cst : f32 to vector<1x128xf32>
    %1002 = arith.addf %1001, %1000 : vector<1x128xf32>
    %1003 = tpu.reciprocal %1002 : vector<1x128xf32> -> vector<1x128xf32>
    %1004 = vector.broadcast %cst : f32 to vector<1x128xf32>
    %1005 = arith.addf %1004, %988 : vector<1x128xf32>
    %1006 = arith.mulf %976, %1005 : vector<1x128xf32>
    %1007 = arith.mulf %1006, %1003 : vector<1x128xf32>
    %1008 = vector.broadcast %cst : f32 to vector<1x128xf32>
    %1009 = arith.addf %1008, %991 : vector<1x128xf32>
    %1010 = arith.mulf %977, %1009 : vector<1x128xf32>
    %1011 = arith.mulf %1010, %1003 : vector<1x128xf32>
    %1012 = vector.broadcast %2 : f32 to vector<1x128xf32>
    %1013 = arith.subf %1011, %1012 : vector<1x128xf32>
    %1014 = vector.broadcast %0 : f32 to vector<1x128xf32>
    %1015 = arith.mulf %1013, %1014 : vector<1x128xf32>
    %cst_252 = arith.constant 0.000000e+00 : f32
    %1016 = vector.broadcast %cst_252 : f32 to vector<1x128xf32>
    %1017 = arith.maximumf %1015, %1016 : vector<1x128xf32>
    %cst_253 = arith.constant 0.000000e+00 : f32
    %1018 = vector.broadcast %cst_253 : f32 to vector<1x128xf32>
    %1019 = arith.subf %1018, %1017 : vector<1x128xf32>
    %1020 = vector.broadcast %3 : f32 to vector<1x128xf32>
    %1021 = arith.addf %1019, %1020 : vector<1x128xf32>
    %cst_254 = arith.constant 0.000000e+00 : f32
    %1022 = vector.broadcast %cst_254 : f32 to vector<1x128xf32>
    %1023 = arith.maximumf %1021, %1022 : vector<1x128xf32>
    %cst_255 = arith.constant 0.000000e+00 : f32
    %1024 = vector.broadcast %cst_255 : f32 to vector<1x128xf32>
    %1025 = arith.subf %1024, %1023 : vector<1x128xf32>
    %1026 = vector.broadcast %4 : f32 to vector<1x128xf32>
    %1027 = arith.addf %1025, %1026 : vector<1x128xf32>
    %1028 = vector.broadcast %5 : f32 to vector<1x128xf32>
    %1029 = arith.subf %1011, %1028 : vector<1x128xf32>
    %1030 = vector.broadcast %0 : f32 to vector<1x128xf32>
    %1031 = arith.mulf %1029, %1030 : vector<1x128xf32>
    %cst_256 = arith.constant 0.000000e+00 : f32
    %1032 = vector.broadcast %cst_256 : f32 to vector<1x128xf32>
    %1033 = arith.maximumf %1031, %1032 : vector<1x128xf32>
    %cst_257 = arith.constant 0.000000e+00 : f32
    %1034 = vector.broadcast %cst_257 : f32 to vector<1x128xf32>
    %1035 = arith.subf %1034, %1033 : vector<1x128xf32>
    %1036 = vector.broadcast %6 : f32 to vector<1x128xf32>
    %1037 = arith.addf %1035, %1036 : vector<1x128xf32>
    %cst_258 = arith.constant 0.000000e+00 : f32
    %1038 = vector.broadcast %cst_258 : f32 to vector<1x128xf32>
    %1039 = arith.maximumf %1037, %1038 : vector<1x128xf32>
    %cst_259 = arith.constant 0.000000e+00 : f32
    %1040 = vector.broadcast %cst_259 : f32 to vector<1x128xf32>
    %1041 = arith.subf %1040, %1039 : vector<1x128xf32>
    %1042 = vector.broadcast %7 : f32 to vector<1x128xf32>
    %1043 = arith.addf %1041, %1042 : vector<1x128xf32>
    %1044 = vector.broadcast %8 : f32 to vector<1x128xf32>
    %1045 = arith.subf %1007, %1044 : vector<1x128xf32>
    %1046 = vector.broadcast %1 : f32 to vector<1x128xf32>
    %1047 = arith.mulf %1045, %1046 : vector<1x128xf32>
    %cst_260 = arith.constant 0.000000e+00 : f32
    %1048 = vector.broadcast %cst_260 : f32 to vector<1x128xf32>
    %1049 = arith.maximumf %1047, %1048 : vector<1x128xf32>
    %cst_261 = arith.constant 0.000000e+00 : f32
    %1050 = vector.broadcast %cst_261 : f32 to vector<1x128xf32>
    %1051 = arith.subf %1050, %1049 : vector<1x128xf32>
    %1052 = vector.broadcast %9 : f32 to vector<1x128xf32>
    %1053 = arith.addf %1051, %1052 : vector<1x128xf32>
    %cst_262 = arith.constant 0.000000e+00 : f32
    %1054 = vector.broadcast %cst_262 : f32 to vector<1x128xf32>
    %1055 = arith.maximumf %1053, %1054 : vector<1x128xf32>
    %cst_263 = arith.constant 0.000000e+00 : f32
    %1056 = vector.broadcast %cst_263 : f32 to vector<1x128xf32>
    %1057 = arith.subf %1056, %1055 : vector<1x128xf32>
    %1058 = vector.broadcast %10 : f32 to vector<1x128xf32>
    %1059 = arith.addf %1057, %1058 : vector<1x128xf32>
    %1060 = vector.broadcast %11 : f32 to vector<1x128xf32>
    %1061 = arith.subf %1007, %1060 : vector<1x128xf32>
    %1062 = vector.broadcast %1 : f32 to vector<1x128xf32>
    %1063 = arith.mulf %1061, %1062 : vector<1x128xf32>
    %cst_264 = arith.constant 0.000000e+00 : f32
    %1064 = vector.broadcast %cst_264 : f32 to vector<1x128xf32>
    %1065 = arith.maximumf %1063, %1064 : vector<1x128xf32>
    %cst_265 = arith.constant 0.000000e+00 : f32
    %1066 = vector.broadcast %cst_265 : f32 to vector<1x128xf32>
    %1067 = arith.subf %1066, %1065 : vector<1x128xf32>
    %1068 = vector.broadcast %12 : f32 to vector<1x128xf32>
    %1069 = arith.addf %1067, %1068 : vector<1x128xf32>
    %cst_266 = arith.constant 0.000000e+00 : f32
    %1070 = vector.broadcast %cst_266 : f32 to vector<1x128xf32>
    %1071 = arith.maximumf %1069, %1070 : vector<1x128xf32>
    %cst_267 = arith.constant 0.000000e+00 : f32
    %1072 = vector.broadcast %cst_267 : f32 to vector<1x128xf32>
    %1073 = arith.subf %1072, %1071 : vector<1x128xf32>
    %1074 = vector.broadcast %13 : f32 to vector<1x128xf32>
    %1075 = arith.addf %1073, %1074 : vector<1x128xf32>
    %1076 = vector.broadcast %14 : f32 to vector<1x128xf32>
    %1077 = arith.mulf %1076, %994 : vector<1x128xf32>
    %1078 = vector.broadcast %16 : f32 to vector<1x128xf32>
    %1079 = arith.mulf %1078, %1007 : vector<1x128xf32>
    %1080 = arith.addf %1077, %1079 : vector<1x128xf32>
    %1081 = arith.subf %1080, %1027 : vector<1x128xf32>
    %cst_268 = arith.constant 0.000000e+00 : f32
    %1082 = vector.broadcast %cst_268 : f32 to vector<1x128xf32>
    %1083 = arith.maximumf %1081, %1082 : vector<1x128xf32>
    %1084 = vector.broadcast %18 : f32 to vector<1x128xf32>
    %1085 = arith.mulf %1084, %1083 : vector<1x128xf32>
    %1086 = arith.addf %1085, %1043 : vector<1x128xf32>
    %1087 = arith.subf %1086, %1027 : vector<1x128xf32>
    %cst_269 = arith.constant 0.000000e+00 : f32
    %1088 = vector.broadcast %cst_269 : f32 to vector<1x128xf32>
    %1089 = arith.maximumf %1087, %1088 : vector<1x128xf32>
    %1090 = vector.broadcast %20 : f32 to vector<1x128xf32>
    %1091 = arith.mulf %1090, %1089 : vector<1x128xf32>
    %1092 = arith.addf %1091, %1043 : vector<1x128xf32>
    %1093 = vector.broadcast %15 : f32 to vector<1x128xf32>
    %1094 = arith.mulf %1093, %997 : vector<1x128xf32>
    %1095 = vector.broadcast %17 : f32 to vector<1x128xf32>
    %1096 = arith.mulf %1095, %1011 : vector<1x128xf32>
    %1097 = arith.addf %1094, %1096 : vector<1x128xf32>
    %1098 = arith.subf %1097, %1059 : vector<1x128xf32>
    %cst_270 = arith.constant 0.000000e+00 : f32
    %1099 = vector.broadcast %cst_270 : f32 to vector<1x128xf32>
    %1100 = arith.maximumf %1098, %1099 : vector<1x128xf32>
    %1101 = vector.broadcast %19 : f32 to vector<1x128xf32>
    %1102 = arith.mulf %1101, %1100 : vector<1x128xf32>
    %1103 = arith.addf %1102, %1075 : vector<1x128xf32>
    %1104 = arith.subf %1103, %1059 : vector<1x128xf32>
    %cst_271 = arith.constant 0.000000e+00 : f32
    %1105 = vector.broadcast %cst_271 : f32 to vector<1x128xf32>
    %1106 = arith.maximumf %1104, %1105 : vector<1x128xf32>
    %1107 = vector.broadcast %21 : f32 to vector<1x128xf32>
    %1108 = arith.mulf %1107, %1106 : vector<1x128xf32>
    %1109 = arith.addf %1108, %1075 : vector<1x128xf32>
    %c0_i32_272 = arith.constant 0 : i32
    %1110 = arith.cmpi eq, %arg1, %c0_i32_272 : i32
    %c0_i32_273 = arith.constant 0 : i32
    %1111 = arith.cmpi eq, %c7_i32, %c0_i32_273 : i32
    %1112 = arith.andi %1110, %1111 : i1
    %1113 = arith.select %1112, %994, %1092 : vector<1x128xf32>
    %1114 = arith.select %1112, %997, %1109 : vector<1x128xf32>
    %c0_274 = arith.constant 0 : index
    %1115 = arith.index_cast %c7_i32 : i32 to index
    %c0_275 = arith.constant 0 : index
    %1116 = vector.load %arg5[%c0_274, %1115, %c0_275] : memref<2x8x128xf32, #tpu.memory_space<vmem>>, vector<1x1x128xf32>
    %1117 = vector.shape_cast %1116 : vector<1x1x128xf32> to vector<1x128xf32>
    %1118 = vector.shape_cast %1113 : vector<1x128xf32> to vector<1x1x128xf32>
    tpu.vector_store %arg5[%c0_274, %1115, %c0_275], %1118 {strides = array<i32>} : memref<2x8x128xf32, #tpu.memory_space<vmem>>, vector<1x1x128xf32>,
    %c1_276 = arith.constant 1 : index
    %1119 = arith.index_cast %c7_i32 : i32 to index
    %c0_277 = arith.constant 0 : index
    %1120 = vector.load %arg5[%c1_276, %1119, %c0_277] : memref<2x8x128xf32, #tpu.memory_space<vmem>>, vector<1x1x128xf32>
    %1121 = vector.shape_cast %1120 : vector<1x1x128xf32> to vector<1x128xf32>
    %1122 = vector.shape_cast %1114 : vector<1x128xf32> to vector<1x1x128xf32>
    tpu.vector_store %arg5[%c1_276, %1119, %c0_277], %1122 {strides = array<i32>} : memref<2x8x128xf32, #tpu.memory_space<vmem>>, vector<1x1x128xf32>,
    %c8_i32 = arith.constant 8 : i32
    %c0_278 = arith.constant 0 : index
    %c0_279 = arith.constant 0 : index
    %1123 = vector.load %arg6[%c0_278, %c0_279] : memref<2x128xf32, #tpu.memory_space<vmem>>, vector<1x128xf32>
    tpu.vector_store %arg6[%c0_278, %c0_279], %1113 {strides = array<i32>} : memref<2x128xf32, #tpu.memory_space<vmem>>, vector<1x128xf32>,
    %c1_280 = arith.constant 1 : index
    %c0_281 = arith.constant 0 : index
    %1124 = vector.load %arg6[%c1_280, %c0_281] : memref<2x128xf32, #tpu.memory_space<vmem>>, vector<1x128xf32>
    tpu.vector_store %arg6[%c1_280, %c0_281], %1114 {strides = array<i32>} : memref<2x128xf32, #tpu.memory_space<vmem>>, vector<1x128xf32>,
    return
  }
  func.func @transform_0(%arg0: i32, %arg1: i32, %arg2: memref<22xf32, #tpu.memory_space<smem>>) -> (i32, i32, i32) {
    %c0_i32 = arith.constant 0 : i32
    %c0_i32_0 = arith.constant 0 : i32
    return %c0_i32, %arg1, %arg0 : i32, i32, i32
  }
  func.func @transform_1(%arg0: i32, %arg1: i32, %arg2: memref<22xf32, #tpu.memory_space<smem>>) -> (i32, i32, i32) {
    %c0_i32 = arith.constant 0 : i32
    %c0_i32_0 = arith.constant 0 : i32
    return %c0_i32, %arg1, %arg0 : i32, i32, i32
  }
  func.func @transform_2(%arg0: i32, %arg1: i32, %arg2: memref<22xf32, #tpu.memory_space<smem>>) -> (i32, i32, i32) {
    %c0_i32 = arith.constant 0 : i32
    %c0_i32_0 = arith.constant 0 : i32
    return %c0_i32, %arg1, %arg0 : i32, i32, i32
  }
}

</mosaic_0001>

<llo_original>
// kernel: tpu_custom_call.1
$region0: #{tpu_custom_call.1}
  #allocation0 [shape = 'u32[]', space=smem, size = 0x4, offset = 0x4, fixed_abs, tag = 'smem constant byte address 0x4 - core index']
  #allocation1 [shape = 'u32[144,128]{1,0:T(1,128)}', space=vmem, size = 0x12000, scoped, tag = 'internal scratch']
  #allocation2 [shape = 'f32[2,128]{1,0:T(2,128)}', space=vmem, size = 0x400, scoped, tag = 'scratch operand']
  #allocation3 [shape = 's32[1]{0}', space=sflag, size = 0x4, scoped, tag = 'scoped memory for tpu_custom_call.1']
  #allocation4 [shape = 'u8[512]{0}', space=smem, size = 0x200, scoped, tag = 'prefetched SMEM operand 0']
  %s0 = inlined_call_operand.hbm [shape: f32[22], index: 0, kind: input, shape index: {}]
  %s1 = inlined_call_operand.hbm [shape: f32[2,8,128], index: 1, kind: input, shape index: {}]
  %s2 = inlined_call_operand.hbm [shape: f32[2,8,128], index: 2, kind: input, shape index: {}]
  %s3 = inlined_call_operand.hbm [shape: f32[2,8,128], index: 3, kind: output, shape index: {}]
  %s4 = sld [smem:[#allocation0]]
  $region30: #{tpu_custom_call.1} parent=0
    _
  %s6 = ssub.s32 1, %s4
  %s7 = scalar_select 0, %s6, %s4
  %9 = dma.hbm_to_smem %s0, 16, [#allocation4], [#allocation3]
  %10 = dma.done [#allocation3], 16
  %11 = sfence
  $region1: #{tpu_custom_call.1} parent=0
    #allocation5 [shape = 'u8[8192]{0}', space=vmem, size = 0x2000, scoped, tag = 'input window, operand 1, single buffered']
    #allocation6 [shape = 's32[1]{0}', space=sflag, size = 0x4, scoped, tag = 'scoped memory for tpu_custom_call.1']
    #allocation7 [shape = 's32[1]{0}', space=sflag, size = 0x4, scoped, tag = 'scoped memory for tpu_custom_call.1']
    #allocation8 [shape = 'u8[8192]{0}', space=vmem, size = 0x2000, scoped, tag = 'input window, operand 2, single buffered']
    #allocation9 [shape = 's32[1]{0}', space=sflag, size = 0x4, scoped, tag = 'scoped memory for tpu_custom_call.1']
    #allocation10 [shape = 'u8[8192]{0}', space=vmem, size = 0x2000, scoped, tag = 'output window, operand 0, single buffered']
    %12 = vsyncpa [#allocation6], 0
    %13 = vsyncpa [#allocation9], 0
    %14 = vsyncpa [#allocation7], 0
    // Predicated region
    $region2: #{tpu_custom_call.1} parent=1 // pred_check
      _
    $region3: #{tpu_custom_call.1} parent=1 // pred_check_branch
      %16 = sbr.rel (0) target = $region5
    $region4: #{tpu_custom_call.1} parent=1 // pred_region
      %s18 = ssub.s32 256, 256
      %19 = vsyncadd [#allocation6], %s18
      %s20 = sshll.u32 [#allocation5], 4
      %s21 = int_to_ptr.vmem [resolvable:$true] %s20
      %26 = dma.hbm_to_vmem [thread:$0]  %s1, 256, %s21, [#allocation6], 128, 128, 8
    $region5: #{tpu_custom_call.1} parent=1 // pred_fallthru
      _
    // Predicated region
    $region6: #{tpu_custom_call.1} parent=1 // pred_check
      _
    $region7: #{tpu_custom_call.1} parent=1 // pred_check_branch
      %28 = sbr.rel (0) target = $region9
    $region8: #{tpu_custom_call.1} parent=1 // pred_region
      %s30 = ssub.s32 256, 256
      %31 = vsyncadd [#allocation9], %s30
      %s32 = sshll.u32 [#allocation8], 4
      %s33 = int_to_ptr.vmem [resolvable:$true] %s32
      %38 = dma.hbm_to_vmem [thread:$0]  %s2, 256, %s33, [#allocation9], 128, 128, 8
    $region9: #{tpu_custom_call.1} parent=1 // pred_fallthru
      _
    // Predicated region
    $region10: #{tpu_custom_call.1} parent=1 // pred_check
      _
    $region11: #{tpu_custom_call.1} parent=1 // pred_check_branch
      %40 = sbr.rel (0) target = $region13
    $region12: #{tpu_custom_call.1} parent=1 // pred_region
      %41 = dma.done [#allocation6], 256
    $region13: #{tpu_custom_call.1} parent=1 // pred_fallthru
      _
    // Predicated region
    $region14: #{tpu_custom_call.1} parent=1 // pred_check
      _
    $region15: #{tpu_custom_call.1} parent=1 // pred_check_branch
      %43 = sbr.rel (0) target = $region17
    $region16: #{tpu_custom_call.1} parent=1 // pred_region
      %44 = dma.done [#allocation9], 256
    $region17: #{tpu_custom_call.1} parent=1 // pred_fallthru
      _
    %s45 = sld [smem:[#allocation4]]
    %s46 = sld [smem:[#allocation4 + $0x1]]
    %s47 = sld [smem:[#allocation4 + $0x2]]
    %s48 = sld [smem:[#allocation4 + $0x3]]
    %s49 = sld [smem:[#allocation4 + $0x4]]
    %s50 = sld [smem:[#allocation4 + $0x5]]
    %s51 = sld [smem:[#allocation4 + $0x6]]
    %s52 = sld [smem:[#allocation4 + $0x7]]
    %s53 = sld [smem:[#allocation4 + $0x8]]
    %s54 = sld [smem:[#allocation4 + $0x9]]
    %s55 = sld [smem:[#allocation4 + $0xa]]
    %s56 = sld [smem:[#allocation4 + $0xb]]
    %s57 = sld [smem:[#allocation4 + $0xc]]
    %s58 = sld [smem:[#allocation4 + $0xd]]
    %s59 = sld [smem:[#allocation4 + $0xe]]
    %s60 = sld [smem:[#allocation4 + $0xf]]
    %s61 = sld [smem:[#allocation4 + $0x10]]
    %s62 = sld [smem:[#allocation4 + $0x11]]
    %s63 = sld [smem:[#allocation4 + $0x12]]
    %s64 = sld [smem:[#allocation4 + $0x13]]
    %s65 = sld [smem:[#allocation4 + $0x14]]
    %s66 = sld [smem:[#allocation4 + $0x15]]
    %p67 = scmp.eq.s32.totalorder 0, 0
    // Predicated region
    $region18: #{tpu_custom_call.1} parent=1 // pred_check
      %p68 = pneg %p67
    $region19: #{tpu_custom_call.1} parent=1 // pred_check_branch
      %70 = sbr.rel (%p68) target = $region21
    $region20: #{tpu_custom_call.1} parent=1 // pred_region
      %71 = vst [vmem:[#allocation2] sm:$0x3] 0.0
    $region21: #{tpu_custom_call.1} parent=1 // pred_fallthru
      _
    %v72 = vld [vmem:[#allocation2] sm:$0x1]
    %v73 = vld [vmem:[#allocation2 + $0x1] sm:$0x1]
    %v74 = vld [vmem:[#allocation8] sm:$0x1]
    %s75 = scalar_lea.vmem [#allocation8], 8
    %v76 = vld [vmem:[%s75] sm:$0x1]
    %v77 = vld [vmem:[#allocation5] sm:$0x1]
    %s78 = scalar_lea.vmem [#allocation5], 8
    %v79 = vld [vmem:[%s78] sm:$0x1]
    %v80 = vmul.f32 %v72, %v74
    %v81 = vmul.f32 %v73, %v76
    %v82 = vadd.f32 %v80, %v81
    %v83 = vadd.f32 %v82, 1.0
    %v84 = vrcp.pop %v83
    %v85 = vadd.f32 %v74, 1.0
    %v86 = vmul.f32 %v72, %v85
    %v87 = vmul.f32 %v86, %v84
    %v88 = vadd.f32 %v76, 1.0
    %v89 = vmul.f32 %v73, %v88
    %v90 = vmul.f32 %v89, %v84
    %v91 = vstv %s47
    %v92 = vsub.f32 %v90, %v91
    %v93 = vstv %s45
    %v94 = vmul.f32 %v92, %v93
    %v95 = vmax.f32 %v94, 0.0
    %v96 = vsub.f32 0.0, %v95
    %v97 = vstv %s48
    %v98 = vadd.f32 %v96, %v97
    %v99 = vmax.f32 %v98, 0.0
    %v100 = vsub.f32 0.0, %v99
    %v101 = vstv %s49
    %v102 = vadd.f32 %v100, %v101
    %v103 = vstv %s50
    %v104 = vsub.f32 %v90, %v103
    %v105 = vmul.f32 %v104, %v93
    %v106 = vmax.f32 %v105, 0.0
    %v107 = vsub.f32 0.0, %v106
    %v108 = vstv %s51
    %v109 = vadd.f32 %v107, %v108
    %v110 = vmax.f32 %v109, 0.0
    %v111 = vsub.f32 0.0, %v110
    %v112 = vstv %s52
    %v113 = vadd.f32 %v111, %v112
    %v114 = vstv %s53
    %v115 = vsub.f32 %v87, %v114
    %v116 = vstv %s46
    %v117 = vmul.f32 %v115, %v116
    %v118 = vmax.f32 %v117, 0.0
    %v119 = vsub.f32 0.0, %v118
    %v120 = vstv %s54
    %v121 = vadd.f32 %v119, %v120
    %v122 = vmax.f32 %v121, 0.0
    %v123 = vsub.f32 0.0, %v122
    %v124 = vstv %s55
    %v125 = vadd.f32 %v123, %v124
    %v126 = vstv %s56
    %v127 = vsub.f32 %v87, %v126
    %v128 = vmul.f32 %v127, %v116
    %v129 = vmax.f32 %v128, 0.0
    %v130 = vsub.f32 0.0, %v129
    %v131 = vstv %s57
    %v132 = vadd.f32 %v130, %v131
    %v133 = vmax.f32 %v132, 0.0
    %v134 = vsub.f32 0.0, %v133
    %v135 = vstv %s58
    %v136 = vadd.f32 %v134, %v135
    %v137 = vstv %s59
    %v138 = vmul.f32 %v137, %v77
    %v139 = vstv %s61
    %v140 = vmul.f32 %v139, %v87
    %v141 = vadd.f32 %v138, %v140
    %v142 = vsub.f32 %v141, %v102
    %v143 = vmax.f32 %v142, 0.0
    %v144 = vstv %s63
    %v145 = vmul.f32 %v144, %v143
    %v146 = vadd.f32 %v145, %v113
    %v147 = vsub.f32 %v146, %v102
    %v148 = vmax.f32 %v147, 0.0
    %v149 = vstv %s65
    %v150 = vmul.f32 %v149, %v148
    %v151 = vadd.f32 %v150, %v113
    %v152 = vstv %s60
    %v153 = vmul.f32 %v152, %v79
    %v154 = vstv %s62
    %v155 = vmul.f32 %v154, %v90
    %v156 = vadd.f32 %v153, %v155
    %v157 = vsub.f32 %v156, %v125
    %v158 = vmax.f32 %v157, 0.0
    %v159 = vstv %s64
    %v160 = vmul.f32 %v159, %v158
    %v161 = vadd.f32 %v160, %v136
    %v162 = vsub.f32 %v161, %v125
    %v163 = vmax.f32 %v162, 0.0
    %v164 = vstv %s66
    %v165 = vmul.f32 %v164, %v163
    %v166 = vadd.f32 %v165, %v136
    %s167 = scalar_select %p67, 1, 0
    %v168 = vstv %s167
    %vm169 = vcmp.eq.s32.totalorder %v168, 1
    %v170 = vsel %vm169, %v77, %v151
    %v171 = vsel %vm169, %v79, %v166
    %172 = vst [vmem:[#allocation10] sm:$0x1] %v170
    %s173 = scalar_lea.vmem [#allocation10], 8
    %174 = vst [vmem:[%s173] sm:$0x1] %v171
    %v175 = vld [vmem:[#allocation8 + $0x1] sm:$0x1]
    %v176 = vld [vmem:[%s75 + $0x1] sm:$0x1]
    %v177 = vld [vmem:[#allocation5 + $0x1] sm:$0x1]
    %v178 = vld [vmem:[%s78 + $0x1] sm:$0x1]
    %v179 = vmul.f32 %v170, %v175
    %v180 = vmul.f32 %v171, %v176
    %v181 = vadd.f32 %v179, %v180
    %v182 = vadd.f32 %v181, 1.0
    %v183 = vrcp.pop %v182
    %v184 = vadd.f32 %v175, 1.0
    %v185 = vmul.f32 %v170, %v184
    %v186 = vmul.f32 %v185, %v183
    %v187 = vadd.f32 %v176, 1.0
    %v188 = vmul.f32 %v171, %v187
    %v189 = vmul.f32 %v188, %v183
    %v190 = vsub.f32 %v189, %v91
    %v191 = vmul.f32 %v190, %v93
    %v192 = vmax.f32 %v191, 0.0
    %v193 = vsub.f32 0.0, %v192
    %v194 = vadd.f32 %v193, %v97
    %v195 = vmax.f32 %v194, 0.0
    %v196 = vsub.f32 0.0, %v195
    %v197 = vadd.f32 %v196, %v101
    %v198 = vsub.f32 %v189, %v103
    %v199 = vmul.f32 %v198, %v93
    %v200 = vmax.f32 %v199, 0.0
    %v201 = vsub.f32 0.0, %v200
    %v202 = vadd.f32 %v201, %v108
    %v203 = vmax.f32 %v202, 0.0
    %v204 = vsub.f32 0.0, %v203
    %v205 = vadd.f32 %v204, %v112
    %v206 = vsub.f32 %v186, %v114
    %v207 = vmul.f32 %v206, %v116
    %v208 = vmax.f32 %v207, 0.0
    %v209 = vsub.f32 0.0, %v208
    %v210 = vadd.f32 %v209, %v120
    %v211 = vmax.f32 %v210, 0.0
    %v212 = vsub.f32 0.0, %v211
    %v213 = vadd.f32 %v212, %v124
    %v214 = vsub.f32 %v186, %v126
    %v215 = vmul.f32 %v214, %v116
    %v216 = vmax.f32 %v215, 0.0
    %v217 = vsub.f32 0.0, %v216
    %v218 = vadd.f32 %v217, %v131
    %v219 = vmax.f32 %v218, 0.0
    %v220 = vsub.f32 0.0, %v219
    %v221 = vadd.f32 %v220, %v135
    %v222 = vmul.f32 %v137, %v177
    %v223 = vmul.f32 %v139, %v186
    %v224 = vadd.f32 %v222, %v223
    %v225 = vsub.f32 %v224, %v197
    %v226 = vmax.f32 %v225, 0.0
    %v227 = vmul.f32 %v144, %v226
    %v228 = vadd.f32 %v227, %v205
    %v229 = vsub.f32 %v228, %v197
    %v230 = vmax.f32 %v229, 0.0
    %v231 = vmul.f32 %v149, %v230
    %v232 = vadd.f32 %v231, %v205
    %v233 = vmul.f32 %v152, %v178
    %v234 = vmul.f32 %v154, %v189
    %v235 = vadd.f32 %v233, %v234
    %v236 = vsub.f32 %v235, %v213
    %v237 = vmax.f32 %v236, 0.0
    %v238 = vmul.f32 %v159, %v237
    %v239 = vadd.f32 %v238, %v221
    %v240 = vsub.f32 %v239, %v213
    %v241 = vmax.f32 %v240, 0.0
    %v242 = vmul.f32 %v164, %v241
    %v243 = vadd.f32 %v242, %v221
    %244 = vst [vmem:[#allocation10 + $0x1] sm:$0x1] %v232
    %245 = vst [vmem:[%s173 + $0x1] sm:$0x1] %v243
    %v246 = vld [vmem:[#allocation8 + $0x2] sm:$0x1]
    %v247 = vld [vmem:[%s75 + $0x2] sm:$0x1]
    %v248 = vld [vmem:[#allocation5 + $0x2] sm:$0x1]
    %v249 = vld [vmem:[%s78 + $0x2] sm:$0x1]
    %v250 = vmul.f32 %v232, %v246
    %v251 = vmul.f32 %v243, %v247
    %v252 = vadd.f32 %v250, %v251
    %v253 = vadd.f32 %v252, 1.0
    %v254 = vrcp.pop %v253
    %v255 = vadd.f32 %v246, 1.0
    %v256 = vmul.f32 %v232, %v255
    %v257 = vmul.f32 %v256, %v254
    %v258 = vadd.f32 %v247, 1.0
    %v259 = vmul.f32 %v243, %v258
    %v260 = vmul.f32 %v259, %v254
    %v261 = vsub.f32 %v260, %v91
    %v262 = vmul.f32 %v261, %v93
    %v263 = vmax.f32 %v262, 0.0
    %v264 = vsub.f32 0.0, %v263
    %v265 = vadd.f32 %v264, %v97
    %v266 = vmax.f32 %v265, 0.0
    %v267 = vsub.f32 0.0, %v266
    %v268 = vadd.f32 %v267, %v101
    %v269 = vsub.f32 %v260, %v103
    %v270 = vmul.f32 %v269, %v93
    %v271 = vmax.f32 %v270, 0.0
    %v272 = vsub.f32 0.0, %v271
    %v273 = vadd.f32 %v272, %v108
    %v274 = vmax.f32 %v273, 0.0
    %v275 = vsub.f32 0.0, %v274
    %v276 = vadd.f32 %v275, %v112
    %v277 = vsub.f32 %v257, %v114
    %v278 = vmul.f32 %v277, %v116
    %v279 = vmax.f32 %v278, 0.0
    %v280 = vsub.f32 0.0, %v279
    %v281 = vadd.f32 %v280, %v120
    %v282 = vmax.f32 %v281, 0.0
    %v283 = vsub.f32 0.0, %v282
    %v284 = vadd.f32 %v283, %v124
    %v285 = vsub.f32 %v257, %v126
    %v286 = vmul.f32 %v285, %v116
    %v287 = vmax.f32 %v286, 0.0
    %v288 = vsub.f32 0.0, %v287
    %v289 = vadd.f32 %v288, %v131
    %v290 = vmax.f32 %v289, 0.0
    %v291 = vsub.f32 0.0, %v290
    %v292 = vadd.f32 %v291, %v135
    %v293 = vmul.f32 %v137, %v248
    %v294 = vmul.f32 %v139, %v257
    %v295 = vadd.f32 %v293, %v294
    %v296 = vsub.f32 %v295, %v268
    %v297 = vmax.f32 %v296, 0.0
    %v298 = vmul.f32 %v144, %v297
    %v299 = vadd.f32 %v298, %v276
    %v300 = vsub.f32 %v299, %v268
    %v301 = vmax.f32 %v300, 0.0
    %v302 = vmul.f32 %v149, %v301
    %v303 = vadd.f32 %v302, %v276
    %v304 = vmul.f32 %v152, %v249
    %v305 = vmul.f32 %v154, %v260
    %v306 = vadd.f32 %v304, %v305
    %v307 = vsub.f32 %v306, %v284
    %v308 = vmax.f32 %v307, 0.0
    %v309 = vmul.f32 %v159, %v308
    %v310 = vadd.f32 %v309, %v292
    %v311 = vsub.f32 %v310, %v284
    %v312 = vmax.f32 %v311, 0.0
    %v313 = vmul.f32 %v164, %v312
    %v314 = vadd.f32 %v313, %v292
    %315 = vst [vmem:[#allocation10 + $0x2] sm:$0x1] %v303
    %316 = vst [vmem:[%s173 + $0x2] sm:$0x1] %v314
    %v317 = vld [vmem:[#allocation8 + $0x3] sm:$0x1]
    %v318 = vld [vmem:[%s75 + $0x3] sm:$0x1]
    %v319 = vld [vmem:[#allocation5 + $0x3] sm:$0x1]
    %v320 = vld [vmem:[%s78 + $0x3] sm:$0x1]
    %v321 = vmul.f32 %v303, %v317
    %v322 = vmul.f32 %v314, %v318
    %v323 = vadd.f32 %v321, %v322
    %v324 = vadd.f32 %v323, 1.0
    %v325 = vrcp.pop %v324
    %v326 = vadd.f32 %v317, 1.0
    %v327 = vmul.f32 %v303, %v326
    %v328 = vmul.f32 %v327, %v325
    %v329 = vadd.f32 %v318, 1.0
    %v330 = vmul.f32 %v314, %v329
    %v331 = vmul.f32 %v330, %v325
    %v332 = vsub.f32 %v331, %v91
    %v333 = vmul.f32 %v332, %v93
    %v334 = vmax.f32 %v333, 0.0
    %v335 = vsub.f32 0.0, %v334
    %v336 = vadd.f32 %v335, %v97
    %v337 = vmax.f32 %v336, 0.0
    %v338 = vsub.f32 0.0, %v337
    %v339 = vadd.f32 %v338, %v101
    %v340 = vsub.f32 %v331, %v103
    %v341 = vmul.f32 %v340, %v93
    %v342 = vmax.f32 %v341, 0.0
    %v343 = vsub.f32 0.0, %v342
    %v344 = vadd.f32 %v343, %v108
    %v345 = vmax.f32 %v344, 0.0
    %v346 = vsub.f32 0.0, %v345
    %v347 = vadd.f32 %v346, %v112
    %v348 = vsub.f32 %v328, %v114
    %v349 = vmul.f32 %v348, %v116
    %v350 = vmax.f32 %v349, 0.0
    %v351 = vsub.f32 0.0, %v350
    %v352 = vadd.f32 %v351, %v120
    %v353 = vmax.f32 %v352, 0.0
    %v354 = vsub.f32 0.0, %v353
    %v355 = vadd.f32 %v354, %v124
    %v356 = vsub.f32 %v328, %v126
    %v357 = vmul.f32 %v356, %v116
    %v358 = vmax.f32 %v357, 0.0
    %v359 = vsub.f32 0.0, %v358
    %v360 = vadd.f32 %v359, %v131
    %v361 = vmax.f32 %v360, 0.0
    %v362 = vsub.f32 0.0, %v361
    %v363 = vadd.f32 %v362, %v135
    %v364 = vmul.f32 %v137, %v319
    %v365 = vmul.f32 %v139, %v328
    %v366 = vadd.f32 %v364, %v365
    %v367 = vsub.f32 %v366, %v339
    %v368 = vmax.f32 %v367, 0.0
    %v369 = vmul.f32 %v144, %v368
    %v370 = vadd.f32 %v369, %v347
    %v371 = vsub.f32 %v370, %v339
    %v372 = vmax.f32 %v371, 0.0
    %v373 = vmul.f32 %v149, %v372
    %v374 = vadd.f32 %v373, %v347
    %v375 = vmul.f32 %v152, %v320
    %v376 = vmul.f32 %v154, %v331
    %v377 = vadd.f32 %v375, %v376
    %v378 = vsub.f32 %v377, %v355
    %v379 = vmax.f32 %v378, 0.0
    %v380 = vmul.f32 %v159, %v379
    %v381 = vadd.f32 %v380, %v363
    %v382 = vsub.f32 %v381, %v355
    %v383 = vmax.f32 %v382, 0.0
    %v384 = vmul.f32 %v164, %v383
    %v385 = vadd.f32 %v384, %v363
    %386 = vst [vmem:[#allocation10 + $0x3] sm:$0x1] %v374
    %387 = vst [vmem:[%s173 + $0x3] sm:$0x1] %v385
    %v388 = vld [vmem:[#allocation8 + $0x4] sm:$0x1]
    %v389 = vld [vmem:[%s75 + $0x4] sm:$0x1]
    %v390 = vld [vmem:[#allocation5 + $0x4] sm:$0x1]
    %v391 = vld [vmem:[%s78 + $0x4] sm:$0x1]
    %v392 = vmul.f32 %v374, %v388
    %v393 = vmul.f32 %v385, %v389
    %v394 = vadd.f32 %v392, %v393
    %v395 = vadd.f32 %v394, 1.0
    %v396 = vrcp.pop %v395
    %v397 = vadd.f32 %v388, 1.0
    %v398 = vmul.f32 %v374, %v397
    %v399 = vmul.f32 %v398, %v396
    %v400 = vadd.f32 %v389, 1.0
    %v401 = vmul.f32 %v385, %v400
    %v402 = vmul.f32 %v401, %v396
    %v403 = vsub.f32 %v402, %v91
    %v404 = vmul.f32 %v403, %v93
    %v405 = vmax.f32 %v404, 0.0
    %v406 = vsub.f32 0.0, %v405
    %v407 = vadd.f32 %v406, %v97
    %v408 = vmax.f32 %v407, 0.0
    %v409 = vsub.f32 0.0, %v408
    %v410 = vadd.f32 %v409, %v101
    %v411 = vsub.f32 %v402, %v103
    %v412 = vmul.f32 %v411, %v93
    %v413 = vmax.f32 %v412, 0.0
    %v414 = vsub.f32 0.0, %v413
    %v415 = vadd.f32 %v414, %v108
    %v416 = vmax.f32 %v415, 0.0
    %v417 = vsub.f32 0.0, %v416
    %v418 = vadd.f32 %v417, %v112
    %v419 = vsub.f32 %v399, %v114
    %v420 = vmul.f32 %v419, %v116
    %v421 = vmax.f32 %v420, 0.0
    %v422 = vsub.f32 0.0, %v421
    %v423 = vadd.f32 %v422, %v120
    %v424 = vmax.f32 %v423, 0.0
    %v425 = vsub.f32 0.0, %v424
    %v426 = vadd.f32 %v425, %v124
    %v427 = vsub.f32 %v399, %v126
    %v428 = vmul.f32 %v427, %v116
    %v429 = vmax.f32 %v428, 0.0
    %v430 = vsub.f32 0.0, %v429
    %v431 = vadd.f32 %v430, %v131
    %v432 = vmax.f32 %v431, 0.0
    %v433 = vsub.f32 0.0, %v432
    %v434 = vadd.f32 %v433, %v135
    %v435 = vmul.f32 %v137, %v390
    %v436 = vmul.f32 %v139, %v399
    %v437 = vadd.f32 %v435, %v436
    %v438 = vsub.f32 %v437, %v410
    %v439 = vmax.f32 %v438, 0.0
    %v440 = vmul.f32 %v144, %v439
    %v441 = vadd.f32 %v440, %v418
    %v442 = vsub.f32 %v441, %v410
    %v443 = vmax.f32 %v442, 0.0
    %v444 = vmul.f32 %v149, %v443
    %v445 = vadd.f32 %v444, %v418
    %v446 = vmul.f32 %v152, %v391
    %v447 = vmul.f32 %v154, %v402
    %v448 = vadd.f32 %v446, %v447
    %v449 = vsub.f32 %v448, %v426
    %v450 = vmax.f32 %v449, 0.0
    %v451 = vmul.f32 %v159, %v450
    %v452 = vadd.f32 %v451, %v434
    %v453 = vsub.f32 %v452, %v426
    %v454 = vmax.f32 %v453, 0.0
    %v455 = vmul.f32 %v164, %v454
    %v456 = vadd.f32 %v455, %v434
    %457 = vst [vmem:[#allocation10 + $0x4] sm:$0x1] %v445
    %458 = vst [vmem:[%s173 + $0x4] sm:$0x1] %v456
    %v459 = vld [vmem:[#allocation8 + $0x5] sm:$0x1]
    %v460 = vld [vmem:[%s75 + $0x5] sm:$0x1]
    %v461 = vld [vmem:[#allocation5 + $0x5] sm:$0x1]
    %v462 = vld [vmem:[%s78 + $0x5] sm:$0x1]
    %v463 = vmul.f32 %v445, %v459
    %v464 = vmul.f32 %v456, %v460
    %v465 = vadd.f32 %v463, %v464
    %v466 = vadd.f32 %v465, 1.0
    %v467 = vrcp.pop %v466
    %v468 = vadd.f32 %v459, 1.0
    %v469 = vmul.f32 %v445, %v468
    %v470 = vmul.f32 %v469, %v467
    %v471 = vadd.f32 %v460, 1.0
    %v472 = vmul.f32 %v456, %v471
    %v473 = vmul.f32 %v472, %v467
    %v474 = vsub.f32 %v473, %v91
    %v475 = vmul.f32 %v474, %v93
    %v476 = vmax.f32 %v475, 0.0
    %v477 = vsub.f32 0.0, %v476
    %v478 = vadd.f32 %v477, %v97
    %v479 = vmax.f32 %v478, 0.0
    %v480 = vsub.f32 0.0, %v479
    %v481 = vadd.f32 %v480, %v101
    %v482 = vsub.f32 %v473, %v103
    %v483 = vmul.f32 %v482, %v93
    %v484 = vmax.f32 %v483, 0.0
    %v485 = vsub.f32 0.0, %v484
    %v486 = vadd.f32 %v485, %v108
    %v487 = vmax.f32 %v486, 0.0
    %v488 = vsub.f32 0.0, %v487
    %v489 = vadd.f32 %v488, %v112
    %v490 = vsub.f32 %v470, %v114
    %v491 = vmul.f32 %v490, %v116
    %v492 = vmax.f32 %v491, 0.0
    %v493 = vsub.f32 0.0, %v492
    %v494 = vadd.f32 %v493, %v120
    %v495 = vmax.f32 %v494, 0.0
    %v496 = vsub.f32 0.0, %v495
    %v497 = vadd.f32 %v496, %v124
    %v498 = vsub.f32 %v470, %v126
    %v499 = vmul.f32 %v498, %v116
    %v500 = vmax.f32 %v499, 0.0
    %v501 = vsub.f32 0.0, %v500
    %v502 = vadd.f32 %v501, %v131
    %v503 = vmax.f32 %v502, 0.0
    %v504 = vsub.f32 0.0, %v503
    %v505 = vadd.f32 %v504, %v135
    %v506 = vmul.f32 %v137, %v461
    %v507 = vmul.f32 %v139, %v470
    %v508 = vadd.f32 %v506, %v507
    %v509 = vsub.f32 %v508, %v481
    %v510 = vmax.f32 %v509, 0.0
    %v511 = vmul.f32 %v144, %v510
    %v512 = vadd.f32 %v511, %v489
    %v513 = vsub.f32 %v512, %v481
    %v514 = vmax.f32 %v513, 0.0
    %v515 = vmul.f32 %v149, %v514
    %v516 = vadd.f32 %v515, %v489
    %v517 = vmul.f32 %v152, %v462
    %v518 = vmul.f32 %v154, %v473
    %v519 = vadd.f32 %v517, %v518
    %v520 = vsub.f32 %v519, %v497
    %v521 = vmax.f32 %v520, 0.0
    %v522 = vmul.f32 %v159, %v521
    %v523 = vadd.f32 %v522, %v505
    %v524 = vsub.f32 %v523, %v497
    %v525 = vmax.f32 %v524, 0.0
    %v526 = vmul.f32 %v164, %v525
    %v527 = vadd.f32 %v526, %v505
    %528 = vst [vmem:[#allocation10 + $0x5] sm:$0x1] %v516
    %529 = vst [vmem:[%s173 + $0x5] sm:$0x1] %v527
    %v530 = vld [vmem:[#allocation8 + $0x6] sm:$0x1]
    %v531 = vld [vmem:[%s75 + $0x6] sm:$0x1]
    %v532 = vld [vmem:[#allocation5 + $0x6] sm:$0x1]
    %v533 = vld [vmem:[%s78 + $0x6] sm:$0x1]
    %v534 = vmul.f32 %v516, %v530
    %v535 = vmul.f32 %v527, %v531
    %v536 = vadd.f32 %v534, %v535
    %v537 = vadd.f32 %v536, 1.0
    %v538 = vrcp.pop %v537
    %v539 = vadd.f32 %v530, 1.0
    %v540 = vmul.f32 %v516, %v539
    %v541 = vmul.f32 %v540, %v538
    %v542 = vadd.f32 %v531, 1.0
    %v543 = vmul.f32 %v527, %v542
    %v544 = vmul.f32 %v543, %v538
    %v545 = vsub.f32 %v544, %v91
    %v546 = vmul.f32 %v545, %v93
    %v547 = vmax.f32 %v546, 0.0
    %v548 = vsub.f32 0.0, %v547
    %v549 = vadd.f32 %v548, %v97
    %v550 = vmax.f32 %v549, 0.0
    %v551 = vsub.f32 0.0, %v550
    %v552 = vadd.f32 %v551, %v101
    %v553 = vsub.f32 %v544, %v103
    %v554 = vmul.f32 %v553, %v93
    %v555 = vmax.f32 %v554, 0.0
    %v556 = vsub.f32 0.0, %v555
    %v557 = vadd.f32 %v556, %v108
    %v558 = vmax.f32 %v557, 0.0
    %v559 = vsub.f32 0.0, %v558
    %v560 = vadd.f32 %v559, %v112
    %v561 = vsub.f32 %v541, %v114
    %v562 = vmul.f32 %v561, %v116
    %v563 = vmax.f32 %v562, 0.0
    %v564 = vsub.f32 0.0, %v563
    %v565 = vadd.f32 %v564, %v120
    %v566 = vmax.f32 %v565, 0.0
    %v567 = vsub.f32 0.0, %v566
    %v568 = vadd.f32 %v567, %v124
    %v569 = vsub.f32 %v541, %v126
    %v570 = vmul.f32 %v569, %v116
    %v571 = vmax.f32 %v570, 0.0
    %v572 = vsub.f32 0.0, %v571
    %v573 = vadd.f32 %v572, %v131
    %v574 = vmax.f32 %v573, 0.0
    %v575 = vsub.f32 0.0, %v574
    %v576 = vadd.f32 %v575, %v135
    %v577 = vmul.f32 %v137, %v532
    %v578 = vmul.f32 %v139, %v541
    %v579 = vadd.f32 %v577, %v578
    %v580 = vsub.f32 %v579, %v552
    %v581 = vmax.f32 %v580, 0.0
    %v582 = vmul.f32 %v144, %v581
    %v583 = vadd.f32 %v582, %v560
    %v584 = vsub.f32 %v583, %v552
    %v585 = vmax.f32 %v584, 0.0
    %v586 = vmul.f32 %v149, %v585
    %v587 = vadd.f32 %v586, %v560
    %v588 = vmul.f32 %v152, %v533
    %v589 = vmul.f32 %v154, %v544
    %v590 = vadd.f32 %v588, %v589
    %v591 = vsub.f32 %v590, %v568
    %v592 = vmax.f32 %v591, 0.0
    %v593 = vmul.f32 %v159, %v592
    %v594 = vadd.f32 %v593, %v576
    %v595 = vsub.f32 %v594, %v568
    %v596 = vmax.f32 %v595, 0.0
    %v597 = vmul.f32 %v164, %v596
    %v598 = vadd.f32 %v597, %v576
    %599 = vst [vmem:[#allocation10 + $0x6] sm:$0x1] %v587
    %600 = vst [vmem:[%s173 + $0x6] sm:$0x1] %v598
    %v601 = vld [vmem:[#allocation8 + $0x7] sm:$0x1]
    %v602 = vld [vmem:[%s75 + $0x7] sm:$0x1]
    %v603 = vld [vmem:[#allocation5 + $0x7] sm:$0x1]
    %v604 = vld [vmem:[%s78 + $0x7] sm:$0x1]
    %v605 = vmul.f32 %v587, %v601
    %v606 = vmul.f32 %v598, %v602
    %v607 = vadd.f32 %v605, %v606
    %v608 = vadd.f32 %v607, 1.0
    %v609 = vrcp.pop %v608
    %v610 = vadd.f32 %v601, 1.0
    %v611 = vmul.f32 %v587, %v610
    %v612 = vmul.f32 %v611, %v609
    %v613 = vadd.f32 %v602, 1.0
    %v614 = vmul.f32 %v598, %v613
    %v615 = vmul.f32 %v614, %v609
    %v616 = vsub.f32 %v615, %v91
    %v617 = vmul.f32 %v616, %v93
    %v618 = vmax.f32 %v617, 0.0
    %v619 = vsub.f32 0.0, %v618
    %v620 = vadd.f32 %v619, %v97
    %v621 = vmax.f32 %v620, 0.0
    %v622 = vsub.f32 0.0, %v621
    %v623 = vadd.f32 %v622, %v101
    %v624 = vsub.f32 %v615, %v103
    %v625 = vmul.f32 %v624, %v93
    %v626 = vmax.f32 %v625, 0.0
    %v627 = vsub.f32 0.0, %v626
    %v628 = vadd.f32 %v627, %v108
    %v629 = vmax.f32 %v628, 0.0
    %v630 = vsub.f32 0.0, %v629
    %v631 = vadd.f32 %v630, %v112
    %v632 = vsub.f32 %v612, %v114
    %v633 = vmul.f32 %v632, %v116
    %v634 = vmax.f32 %v633, 0.0
    %v635 = vsub.f32 0.0, %v634
    %v636 = vadd.f32 %v635, %v120
    %v637 = vmax.f32 %v636, 0.0
    %v638 = vsub.f32 0.0, %v637
    %v639 = vadd.f32 %v638, %v124
    %v640 = vsub.f32 %v612, %v126
    %v641 = vmul.f32 %v640, %v116
    %v642 = vmax.f32 %v641, 0.0
    %v643 = vsub.f32 0.0, %v642
    %v644 = vadd.f32 %v643, %v131
    %v645 = vmax.f32 %v644, 0.0
    %v646 = vsub.f32 0.0, %v645
    %v647 = vadd.f32 %v646, %v135
    %v648 = vmul.f32 %v137, %v603
    %v649 = vmul.f32 %v139, %v612
    %v650 = vadd.f32 %v648, %v649
    %v651 = vsub.f32 %v650, %v623
    %v652 = vmax.f32 %v651, 0.0
    %v653 = vmul.f32 %v144, %v652
    %v654 = vadd.f32 %v653, %v631
    %v655 = vsub.f32 %v654, %v623
    %v656 = vmax.f32 %v655, 0.0
    %v657 = vmul.f32 %v149, %v656
    %v658 = vadd.f32 %v657, %v631
    %v659 = vmul.f32 %v152, %v604
    %v660 = vmul.f32 %v154, %v615
    %v661 = vadd.f32 %v659, %v660
    %v662 = vsub.f32 %v661, %v639
    %v663 = vmax.f32 %v662, 0.0
    %v664 = vmul.f32 %v159, %v663
    %v665 = vadd.f32 %v664, %v647
    %v666 = vsub.f32 %v665, %v639
    %v667 = vmax.f32 %v666, 0.0
    %v668 = vmul.f32 %v164, %v667
    %v669 = vadd.f32 %v668, %v647
    %670 = vst [vmem:[#allocation10 + $0x7] sm:$0x1] %v658
    %671 = vst [vmem:[%s173 + $0x7] sm:$0x1] %v669
    %672 = vst [vmem:[#allocation2] sm:$0x1] %v658
    %673 = vst [vmem:[#allocation2 + $0x1] sm:$0x1] %v669
    // Predicated region
    $region22: #{tpu_custom_call.1} parent=1 // pred_check
      _
    $region23: #{tpu_custom_call.1} parent=1 // pred_check_branch
      %675 = sbr.rel (0) target = $region25
    $region24: #{tpu_custom_call.1} parent=1 // pred_region
      %s677 = ssub.s32 256, 256
      %678 = vsyncadd [#allocation7], %s677
      %s679 = sshll.u32 [#allocation10], 4
      %s680 = int_to_ptr.vmem [resolvable:$true] %s679
      %685 = dma.vmem_to_hbm [thread:$0]  %s680, 256, %s3, [#allocation7], 128, 128, 8
    $region25: #{tpu_custom_call.1} parent=1 // pred_fallthru
      _
    // Predicated region
    $region26: #{tpu_custom_call.1} parent=1 // pred_check
      _
    $region27: #{tpu_custom_call.1} parent=1 // pred_check_branch
      %687 = sbr.rel (0) target = $region29
    $region28: #{tpu_custom_call.1} parent=1 // pred_region
      %688 = dma.done [#allocation7], 256
    $region29: #{tpu_custom_call.1} parent=1 // pred_fallthru
      _
    %689 = vsyncpa [#allocation6], 1
    %690 = vsyncpa [#allocation9], 1
    %691 = vsyncpa [#allocation7], 1

</llo_original>
